<compile_context>
chip_gen: v6e
topology: v6e:2x2x1
jax: 0.10.0
libtpu: 0.0.40
codegen_flags: <defaults>
</compile_context>

<pallas_src>
import functools

import jax
import jax.numpy as jnp
from jax import lax
from jax.experimental import pallas as pl
from jax.experimental.pallas import tpu as pltpu


# ---------------- window functions (used by the pure-JAX reference) ----------
def _parzen_window(dists, width):
    hwidth = width / 2.0
    r = dists / hwidth
    near = (dists <= hwidth / 2.0).astype(jnp.float32)
    tail = ((dists > hwidth / 2.0) & (dists <= hwidth)).astype(jnp.float32)
    return near * (1.0 - 6.0 * r * r * (1.0 - r)) + tail * (2.0 * (1.0 - r) ** 3)


def _uniform_window(dists, width):
    return (dists <= width / 2.0).astype(jnp.float32)


def _round_up(a, b):
    return ((a + b - 1) // b) * b


# ---------------- exact integer floor-div inside the kernel ------------------
def _exact_floordiv(nf, k):
    """Exact floor(nf / k) for non-negative integer-valued f32 `nf`.

    Uses multiply-by-reciprocal + floor with a +-1 correction, so the result
    is bit-exact integer division (for nf < 2**23) using only ops that are
    guaranteed to lower on the TPU VPU (mul / floor / compare / select).
    """
    q = jnp.floor(nf * (1.0 / k))
    r = nf - q * float(k)
    q = q + (r >= float(k)).astype(jnp.float32) - (r < 0.0).astype(jnp.float32)
    return q


# ---------------- Pallas kernel ----------------------------------------------
def _soft_argmax3d_kernel(*refs, temp, base_index, step_size, cube_type,
                          cube_width, Hh, Ww, N, use_mxu):
    if use_mxu:
        x_ref, w_ref, out_ref = refs
    else:
        x_ref, out_ref = refs

    x = x_ref[...].astype(jnp.float32)                  # (TR, N)

    # Stable softmax numerator; the softmax denominator cancels in the final
    # ratio, so we never normalize a full (TR, N) tile (single exp, no
    # full-width divides).
    m = jnp.max(x, axis=-1, keepdims=True)              # raw max (also argmax val)
    z = x - m
    if temp != 1.0:
        z = z * (1.0 / temp)
    s = jnp.exp(z)

    HW = Hh * Ww
    need_coords = (cube_type in ("Parzen", "Uniform")) or (not use_mxu)
    if need_coords:
        nf = lax.broadcasted_iota(jnp.int32, x.shape, 1).astype(jnp.float32)
        d_i = _exact_floordiv(nf, HW)
        rem = nf - d_i * float(HW)
        h_i = _exact_floordiv(rem, Ww)
        w_i = rem - h_i * float(Ww)

    if cube_type in ("Parzen", "Uniform"):
        # First-occurrence argmax over the flat volume (matches torch.argmax),
        # then its (d, h, w) coordinates via the same exact decomposition.
        af = jnp.min(jnp.where(x == m, nf, float(N)), axis=-1, keepdims=True)
        a_d = _exact_floordiv(af, HW)
        a_rem = af - a_d * float(HW)
        a_h = _exact_floordiv(a_rem, Ww)
        a_w = a_rem - a_h * float(Ww)

        dd = d_i - a_d
        dh = h_i - a_h
        dw = w_i - a_w
        dist2 = dd * dd + dh * dh + dw * dw
        hwidth = cube_width / 2.0
        if cube_type == "Uniform":
            # compare squared distances: no sqrt needed
            window = (dist2 <= hwidth * hwidth).astype(jnp.float32)
        else:  # Parzen (polynomial in r needs the sqrt once)
            dists = jnp.sqrt(dist2)
            r = dists / hwidth
            near = (dists <= hwidth / 2.0).astype(jnp.float32)
            tail = ((dists > hwidth / 2.0) & (dists <= hwidth)).astype(jnp.float32)
            window = (near * (1.0 - 6.0 * r * r * (1.0 - r))
                      + tail * (2.0 * (1.0 - r) ** 3))
        s = s * window                                   # fused; never form p

    if use_mxu:
        # One MXU pass computes all four reductions at once: columns of w_ref
        # are [1, ix, iy, iz, 0, ...].  Result is a lane-dense (TR, 128) tile.
        acc = jnp.dot(s, w_ref[...], preferred_element_type=jnp.float32,
                      precision=lax.Precision.HIGHEST)
        inv = 1.0 / acc[:, 0:1]                          # tiny (TR, 1) divide
        out_ref[...] = acc * inv
    else:
        # Fallback (very large N): XLU reductions with in-kernel coordinates.
        ix = base_index + step_size * d_i
        iy = base_index + step_size * h_i
        iz = base_index + step_size * w_i
        denom = jnp.sum(s, axis=-1, keepdims=True)
        xc = jnp.sum(s * ix, axis=-1, keepdims=True)
        yc = jnp.sum(s * iy, axis=-1, keepdims=True)
        zc = jnp.sum(s * iz, axis=-1, keepdims=True)
        inv = 1.0 / denom
        lane = lax.broadcasted_iota(jnp.int32, (s.shape[0], 128), 1)
        out_ref[...] = (jnp.where(lane == 1, xc * inv, 0.0)
                        + jnp.where(lane == 2, yc * inv, 0.0)
                        + jnp.where(lane == 3, zc * inv, 0.0))


# ---------------- wrapper -----------------------------------------------------
def soft_argmax_3d(x, *, base_index=0, step_size=1, cube_fn=None,
                   cube_width=10, softmax_temp=1.0, use_mxu=None):
    B, C, Dd, Hh, Ww = x.shape
    assert Dd == Hh == Ww, (
        "the reference PyTorch module only broadcasts correctly for cubic "
        "volumes (depth == height == width)")
    N = Dd * Hh * Ww
    BC = B * C

    x_flat = x.reshape(BC, N)            # native dtype; cast to f32 in-kernel

    # Row tile: keep one (TR, N) f32 temporary <= ~1 MiB so several live
    # temporaries + double-buffered inputs stay well inside VMEM on every
    # generation (incl. v7x's 64 MiB).  Cap 512 rows, floor 8, multiple of 8.
    tr_cap = max(8, min(512, ((1 << 20) // (N * 4)) // 8 * 8))
    TR = min(tr_cap, _round_up(BC, 8))
    BC_pad = _round_up(BC, TR)
    if BC_pad != BC:
        x_flat = jnp.pad(x_flat, ((0, BC_pad - BC), (0, 0)))

    # MXU reduction path needs an (N, 128) f32 matrix resident in VMEM; use it
    # whenever that matrix is small and lane-aligned, else fall back to
    # in-kernel XLU reductions.
    if use_mxu is None:
        use_mxu = (N % 128 == 0) and (N * 128 * 4 <= 4 * 1024 * 1024)

    kernel = functools.partial(
        _soft_argmax3d_kernel,
        temp=float(softmax_temp), base_index=float(base_index),
        step_size=float(step_size), cube_type=cube_fn,
        cube_width=float(cube_width), Hh=Hh, Ww=Ww, N=N, use_mxu=use_mxu)

    in_specs = [pl.BlockSpec((TR, N), lambda r: (r, 0))]
    operands = [x_flat]
    if use_mxu:
        n_idx = jnp.arange(N, dtype=jnp.int32)
        d_i = n_idx // (Hh * Ww)
        h_i = (n_idx // Ww) % Hh
        w_i = n_idx % Ww
        wmat = jnp.zeros((N, 128), jnp.float32)
        wmat = wmat.at[:, 0].set(1.0)
        wmat = wmat.at[:, 1].set((base_index + step_size * d_i).astype(jnp.float32))
        wmat = wmat.at[:, 2].set((base_index + step_size * h_i).astype(jnp.float32))
        wmat = wmat.at[:, 3].set((base_index + step_size * w_i).astype(jnp.float32))
        # constant index_map -> DMA'd into VMEM once, not per grid step
        in_specs.append(pl.BlockSpec((N, 128), lambda r: (0, 0)))
        operands.append(wmat)

    out = pl.pallas_call(
        kernel,
        out_shape=jax.ShapeDtypeStruct((BC_pad, 128), jnp.float32),
        grid_spec=pltpu.PrefetchScalarGridSpec(
            num_scalar_prefetch=0,
            grid=(BC_pad // TR,),
            in_specs=in_specs,
            out_specs=pl.BlockSpec((TR, 128), lambda r: (r, 0)),
        ),
        compiler_params=pltpu.CompilerParams(
            dimension_semantics=("parallel",),
            vmem_limit_bytes=48 * 1024 * 1024),
    )(*operands)

    # lanes [1:4] hold [x, y, z]; lane 0 is the (normalized-to-1) denominator
    return out[:BC, 1:4].reshape(B, C, 3)


# ---------------- pure-JAX reference (mirrors the PyTorch forward) ------------
def soft_argmax_3d_ref(x, *, base_index=0, step_size=1, cube_fn=None,
                       cube_width=10, softmax_temp=1.0):
    B, C, Dd, Hh, Ww = x.shape
    N = Dd * Hh * Ww
    xf = x.reshape(B * C, N).astype(jnp.float32)
    p = jax.nn.softmax(xf / softmax_temp, axis=-1)

    d_idx, h_idx, w_idx = jnp.meshgrid(
        jnp.arange(Dd), jnp.arange(Hh), jnp.arange(Ww), indexing="ij")
    dv = d_idx.reshape(1, N).astype(jnp.float32)
    hv = h_idx.reshape(1, N).astype(jnp.float32)
    wv = w_idx.reshape(1, N).astype(jnp.float32)

    if cube_fn is None:
        window = jnp.ones_like(p)
    else:
        amax = jnp.argmax(xf, axis=-1).astype(jnp.float32)[:, None]
        a_x = jnp.floor(amax / float(Hh * Dd))
        a_y = jnp.mod(jnp.floor(amax / float(Dd)), float(Hh))
        a_z = jnp.mod(amax, float(Dd))
        dists = jnp.sqrt((dv - a_x) ** 2 + (hv - a_y) ** 2 + (wv - a_z) ** 2)
        if cube_fn == "Parzen":
            window = _parzen_window(dists, float(cube_width))
        elif cube_fn == "Uniform":
            window = _uniform_window(dists, float(cube_width))
        else:
            window = jnp.ones_like(p)

    smax = p * window
    smax = smax / jnp.sum(smax, axis=-1, keepdims=True)
    ix = base_index + step_size * dv
    iy = base_index + step_size * hv
    iz = base_index + step_size * wv
    xc = jnp.sum(smax * ix, axis=-1)
    yc = jnp.sum(smax * iy, axis=-1)
    zc = jnp.sum(smax * iz, axis=-1)
    return jnp.stack([xc, yc, zc], axis=-1).reshape(B, C, 3)


if __name__ == "__main__":
    key = jax.random.PRNGKey(0)
    B, C, S = 2, 4, 8                      # cubic volume: D = H = W = 8
    x = jax.random.normal(key, (B, C, S, S, S), dtype=jnp.float32) * 3.0

    # 1) default config (identity window), as the PyTorch module default
    out = jax.block_until_ready(soft_argmax_3d(x))
    ref = soft_argmax_3d_ref(x)
    assert out.shape == (B, C, 3)
    assert jnp.allclose(out, ref, atol=1e-4, rtol=1e-4), (out, ref)

    # 2) Parzen-window config
    out_p = jax.block_until_ready(soft_argmax_3d(x, cube_fn="Parzen", cube_width=10))
    ref_p = soft_argmax_3d_ref(x, cube_fn="Parzen", cube_width=10)
    assert jnp.allclose(out_p, ref_p, atol=1e-4, rtol=1e-4), (out_p, ref_p)

    # 3) Uniform window + temperature + index offsets
    kw = dict(cube_fn="Uniform", cube_width=6, softmax_temp=0.5,
              base_index=1, step_size=2)
    out_u = jax.block_until_ready(soft_argmax_3d(x, **kw))
    ref_u = soft_argmax_3d_ref(x, **kw)
    assert jnp.allclose(out_u, ref_u, atol=1e-4, rtol=1e-4), (out_u, ref_u)

    # 4) exercise the non-MXU (large-N fallback) reduction path as well
    out_f = jax.block_until_ready(soft_argmax_3d(x, use_mxu=False))
    assert jnp.allclose(out_f, ref, atol=1e-4, rtol=1e-4), (out_f, ref)

    print("KERNEL_OK")
</pallas_src>

<mosaic_0001>
module attributes {stable_mosaic.version = 11 : i64} {
  func.func @_soft_argmax3d_kernel(%arg0: i32, %arg1: memref<8x512xf32, #tpu.memory_space<vmem>>, %arg2: memref<512x128xf32, #tpu.memory_space<vmem>>, %arg3: memref<8x128xf32, #tpu.memory_space<vmem>>) attributes {dimension_semantics = [#tpu.dimension_semantics<parallel>], iteration_bounds = array<i64: 1>, scalar_prefetch = 0 : i64, scratch_operands = 0 : i64, tpu.core_type = #tpu.core_type<tc>, window_params = [{transform_indices = @transform_0, window_bounds = array<i64: 8, 512>}, {pipeline_mode = #tpu.pipeline_mode<synchronous>, transform_indices = @transform_1, window_bounds = array<i64: 512, 128>}, {transform_indices = @transform_2, window_bounds = array<i64: 8, 128>}]} {
    %c0 = arith.constant 0 : index
    %c0_0 = arith.constant 0 : index
    %0 = vector.load %arg1[%c0, %c0_0] : memref<8x512xf32, #tpu.memory_space<vmem>>, vector<8x512xf32>
    %cst = arith.constant dense<0xFF800000> : vector<8xf32>
    %1 = vector.multi_reduction <maximumf>, %0, %cst [1] : vector<8x512xf32> to vector<8xf32>
    %2 = vector.shape_cast %1 : vector<8xf32> to vector<8x1xf32>
    %3 = vector.broadcast %2 : vector<8x1xf32> to vector<8x512xf32>
    %4 = arith.subf %0, %3 : vector<8x512xf32>
    %5 = math.exp %4 : vector<8x512xf32>
    %c0_1 = arith.constant 0 : index
    %c0_2 = arith.constant 0 : index
    %6 = vector.load %arg2[%c0_1, %c0_2] : memref<512x128xf32, #tpu.memory_space<vmem>>, vector<512x128xf32>
    %cst_3 = arith.constant dense<0.000000e+00> : vector<8x128xf32>
    %7 = tpu.matmul %5, %6, %cst_3 {dimension_numbers = #tpu.dot_dimension_numbers<[1], [0], [0], [1], [0, 0, 1, 1], [], []>, precision = #tpu.contract_precision<fp32>} : vector<8x512xf32>, vector<512x128xf32>, vector<8x128xf32> -> vector<8x128xf32>
    %8 = vector.extract_strided_slice %7 {offsets = [0, 0], sizes = [8, 1], strides = [1, 1]} : vector<8x128xf32> to vector<8x1xf32>
    %cst_4 = arith.constant 1.000000e+00 : f32
    %9 = vector.broadcast %cst_4 : f32 to vector<8x1xf32>
    %10 = arith.divf %9, %8 : vector<8x1xf32>
    %11 = vector.broadcast %10 : vector<8x1xf32> to vector<8x128xf32>
    %12 = arith.mulf %7, %11 : vector<8x128xf32>
    %c0_5 = arith.constant 0 : index
    %c0_6 = arith.constant 0 : index
    %13 = vector.load %arg3[%c0_5, %c0_6] : memref<8x128xf32, #tpu.memory_space<vmem>>, vector<8x128xf32>
    tpu.vector_store %arg3[%c0_5, %c0_6], %12 {strides = array<i32>} : memref<8x128xf32, #tpu.memory_space<vmem>>, vector<8x128xf32>,
    return
  }
  func.func @transform_0(%arg0: i32) -> (i32, i32) {
    %c0_i32 = arith.constant 0 : i32
    %c0_i32_0 = arith.constant 0 : i32
    return %arg0, %c0_i32 : i32, i32
  }
  func.func @transform_1(%arg0: i32) -> (i32, i32) {
    %c0_i32 = arith.constant 0 : i32
    %c0_i32_0 = arith.constant 0 : i32
    %c0_i32_1 = arith.constant 0 : i32
    return %c0_i32, %c0_i32_0 : i32, i32
  }
  func.func @transform_2(%arg0: i32) -> (i32, i32) {
    %c0_i32 = arith.constant 0 : i32
    %c0_i32_0 = arith.constant 0 : i32
    return %arg0, %c0_i32 : i32, i32
  }
}

</mosaic_0001>

<llo_original>
// kernel: tpu_custom_call.1
$region0: #{tpu_custom_call.1}
  #allocation0 [shape = 'u32[]', space=smem, size = 0x4, offset = 0x4, fixed_abs, tag = 'smem constant byte address 0x4 - core index']
  #allocation1 [shape = 'u32[144,128]{1,0:T(1,128)}', space=vmem, size = 0x12000, scoped, tag = 'internal scratch']
  %s0 = inlined_call_operand.hbm [shape: f32[8,512], index: 0, kind: input, shape index: {}]
  %s1 = inlined_call_operand.hbm [shape: f32[512,128], index: 1, kind: input, shape index: {}]
  %s2 = inlined_call_operand.hbm [shape: f32[8,128], index: 2, kind: output, shape index: {}]
  %s3 = sld [smem:[#allocation0]]
  $region26: #{tpu_custom_call.1} parent=0
    _
  %s5 = ssub.s32 1, %s3
  %s6 = scalar_select 0, %s5, %s3
  $region1: #{tpu_custom_call.1} parent=0
    #allocation2 [shape = 'u8[16384]{0}', space=vmem, size = 0x4000, scoped, tag = 'input window, operand 0, single buffered']
    #allocation3 [shape = 's32[1]{0}', space=sflag, size = 0x4, scoped, tag = 'scoped memory for tpu_custom_call.1']
    #allocation4 [shape = 's32[1]{0}', space=sflag, size = 0x4, scoped, tag = 'scoped memory for tpu_custom_call.1']
    #allocation5 [shape = 'u8[262144]{0}', space=vmem, size = 0x40000, scoped, tag = 'input window, operand 1, single buffered']
    #allocation6 [shape = 's32[1]{0}', space=sflag, size = 0x4, scoped, tag = 'scoped memory for tpu_custom_call.1']
    #allocation7 [shape = 'u8[4096]{0}', space=vmem, size = 0x1000, scoped, tag = 'output window, operand 0, single buffered']
    %7 = vsyncpa [#allocation3], 0
    %8 = vsyncpa [#allocation6], 0
    %9 = vsyncpa [#allocation4], 0
    // Predicated region
    $region2: #{tpu_custom_call.1} parent=1 // pred_check
      _
    $region3: #{tpu_custom_call.1} parent=1 // pred_check_branch
      %11 = sbr.rel (0) target = $region5
    $region4: #{tpu_custom_call.1} parent=1 // pred_region
      %s13 = ssub.s32 512, 512
      %14 = vsyncadd [#allocation3], %s13
      %s16 = sshll.u32 [#allocation2], 4
      %s17 = int_to_ptr.vmem [resolvable:$true] %s16
      %19 = dma.hbm_to_vmem [thread:$0]  %s0, 512, %s17, [#allocation3]
    $region5: #{tpu_custom_call.1} parent=1 // pred_fallthru
      _
    // Predicated region
    $region6: #{tpu_custom_call.1} parent=1 // pred_check
      _
    $region7: #{tpu_custom_call.1} parent=1 // pred_check_branch
      %21 = sbr.rel (0) target = $region9
    $region8: #{tpu_custom_call.1} parent=1 // pred_region
      %s23 = ssub.s32 8192, 8192
      %24 = vsyncadd [#allocation6], %s23
      %s25 = sshll.u32 [#allocation5], 4
      %s26 = int_to_ptr.vmem [resolvable:$true] %s25
      %31 = dma.hbm_to_vmem [thread:$0]  %s1, 8192, %s26, [#allocation6], 128, 128, 8
    $region9: #{tpu_custom_call.1} parent=1 // pred_fallthru
      _
    // Predicated region
    $region10: #{tpu_custom_call.1} parent=1 // pred_check
      _
    $region11: #{tpu_custom_call.1} parent=1 // pred_check_branch
      %33 = sbr.rel (0) target = $region13
    $region12: #{tpu_custom_call.1} parent=1 // pred_region
      %34 = dma.done [#allocation3], 512
    $region13: #{tpu_custom_call.1} parent=1 // pred_fallthru
      _
    // Predicated region
    $region14: #{tpu_custom_call.1} parent=1 // pred_check
      _
    $region15: #{tpu_custom_call.1} parent=1 // pred_check_branch
      %36 = sbr.rel (0) target = $region17
    $region16: #{tpu_custom_call.1} parent=1 // pred_region
      %37 = dma.done [#allocation6], 8192
    $region17: #{tpu_custom_call.1} parent=1 // pred_fallthru
      _
    %v38 = vld [vmem:[#allocation2] sm:$0xff]
    %v39 = vld [vmem:[#allocation2 + $0x8] sm:$0xff]
    %v40 = vld [vmem:[#allocation2 + $0x10] sm:$0xff]
    %v41 = vld [vmem:[#allocation2 + $0x18] sm:$0xff]
    %v42 = vmax.f32 %v38, %v39
    %v43 = vmax.f32 %v40, %v41
    %v44 = vmax.f32 %v42, %v43
    %45 = vmax.xlane.f32.xlu0 %v44
    %v46 = vpop.xlane.xlu0 %45
    %v47 = vsub.f32 %v38, %v46
    %v48 = vsub.f32 %v39, %v46
    %v49 = vsub.f32 %v40, %v46
    %v50 = vsub.f32 %v41, %v46
    %v51 = vmul.f32 %v47, 1.442695
    %v52 = vpow.pop %v51
    %v53 = vmul.f32 %v48, 1.442695
    %v54 = vpow.pop %v53
    %v55 = vmul.f32 %v49, 1.442695
    %v56 = vpow.pop %v55
    %v57 = vmul.f32 %v50, 1.442695
    %v58 = vpow.pop %v57
    %v59 = vld [vmem:[#allocation5] sm:$0xff]
    %v60 = vld [vmem:[#allocation5 + $0x8] sm:$0xff]
    %v61 = vld [vmem:[#allocation5 + $0x10] sm:$0xff]
    %v62 = vld [vmem:[#allocation5 + $0x18] sm:$0xff]
    %v63 = vld [vmem:[#allocation5 + $0x20] sm:$0xff]
    %v64 = vld [vmem:[#allocation5 + $0x28] sm:$0xff]
    %v65 = vld [vmem:[#allocation5 + $0x30] sm:$0xff]
    %v66 = vld [vmem:[#allocation5 + $0x38] sm:$0xff]
    %v67 = vld [vmem:[#allocation5 + $0x40] sm:$0xff]
    %v68 = vld [vmem:[#allocation5 + $0x48] sm:$0xff]
    %v69 = vld [vmem:[#allocation5 + $0x50] sm:$0xff]
    %v70 = vld [vmem:[#allocation5 + $0x58] sm:$0xff]
    %v71 = vld [vmem:[#allocation5 + $0x60] sm:$0xff]
    %v72 = vld [vmem:[#allocation5 + $0x68] sm:$0xff]
    %v73 = vld [vmem:[#allocation5 + $0x70] sm:$0xff]
    %v74 = vld [vmem:[#allocation5 + $0x78] sm:$0xff]
    %v75 = vld [vmem:[#allocation5 + $0x80] sm:$0xff]
    %v76 = vld [vmem:[#allocation5 + $0x88] sm:$0xff]
    %v77 = vld [vmem:[#allocation5 + $0x90] sm:$0xff]
    %v78 = vld [vmem:[#allocation5 + $0x98] sm:$0xff]
    %v79 = vld [vmem:[#allocation5 + $0xa0] sm:$0xff]
    %v80 = vld [vmem:[#allocation5 + $0xa8] sm:$0xff]
    %v81 = vld [vmem:[#allocation5 + $0xb0] sm:$0xff]
    %v82 = vld [vmem:[#allocation5 + $0xb8] sm:$0xff]
    %v83 = vld [vmem:[#allocation5 + $0xc0] sm:$0xff]
    %v84 = vld [vmem:[#allocation5 + $0xc8] sm:$0xff]
    %v85 = vld [vmem:[#allocation5 + $0xd0] sm:$0xff]
    %v86 = vld [vmem:[#allocation5 + $0xd8] sm:$0xff]
    %v87 = vld [vmem:[#allocation5 + $0xe0] sm:$0xff]
    %v88 = vld [vmem:[#allocation5 + $0xe8] sm:$0xff]
    %v89 = vld [vmem:[#allocation5 + $0xf0] sm:$0xff]
    %v90 = vld [vmem:[#allocation5 + $0xf8] sm:$0xff]
    %v91 = vld [vmem:[#allocation5 + $0x100] sm:$0xff]
    %v92 = vld [vmem:[#allocation5 + $0x108] sm:$0xff]
    %v93 = vld [vmem:[#allocation5 + $0x110] sm:$0xff]
    %v94 = vld [vmem:[#allocation5 + $0x118] sm:$0xff]
    %v95 = vld [vmem:[#allocation5 + $0x120] sm:$0xff]
    %v96 = vld [vmem:[#allocation5 + $0x128] sm:$0xff]
    %v97 = vld [vmem:[#allocation5 + $0x130] sm:$0xff]
    %v98 = vld [vmem:[#allocation5 + $0x138] sm:$0xff]
    %v99 = vld [vmem:[#allocation5 + $0x140] sm:$0xff]
    %v100 = vld [vmem:[#allocation5 + $0x148] sm:$0xff]
    %v101 = vld [vmem:[#allocation5 + $0x150] sm:$0xff]
    %v102 = vld [vmem:[#allocation5 + $0x158] sm:$0xff]
    %v103 = vld [vmem:[#allocation5 + $0x160] sm:$0xff]
    %v104 = vld [vmem:[#allocation5 + $0x168] sm:$0xff]
    %v105 = vld [vmem:[#allocation5 + $0x170] sm:$0xff]
    %v106 = vld [vmem:[#allocation5 + $0x178] sm:$0xff]
    %v107 = vld [vmem:[#allocation5 + $0x180] sm:$0xff]
    %v108 = vld [vmem:[#allocation5 + $0x188] sm:$0xff]
    %v109 = vld [vmem:[#allocation5 + $0x190] sm:$0xff]
    %v110 = vld [vmem:[#allocation5 + $0x198] sm:$0xff]
    %v111 = vld [vmem:[#allocation5 + $0x1a0] sm:$0xff]
    %v112 = vld [vmem:[#allocation5 + $0x1a8] sm:$0xff]
    %v113 = vld [vmem:[#allocation5 + $0x1b0] sm:$0xff]
    %v114 = vld [vmem:[#allocation5 + $0x1b8] sm:$0xff]
    %v115 = vld [vmem:[#allocation5 + $0x1c0] sm:$0xff]
    %v116 = vld [vmem:[#allocation5 + $0x1c8] sm:$0xff]
    %v117 = vld [vmem:[#allocation5 + $0x1d0] sm:$0xff]
    %v118 = vld [vmem:[#allocation5 + $0x1d8] sm:$0xff]
    %v119 = vld [vmem:[#allocation5 + $0x1e0] sm:$0xff]
    %v120 = vld [vmem:[#allocation5 + $0x1e8] sm:$0xff]
    %v121 = vld [vmem:[#allocation5 + $0x1f0] sm:$0xff]
    %v122 = vld [vmem:[#allocation5 + $0x1f8] sm:$0xff]
    %123 = vmatprep.subr.mxu0 0.0
    %v124 = vand.u32 %v74, 4294901760
    %125 = vmatpush1.msra.mxu0 %v124
    %126 = vmatprep.subr.mxu0 0.0
    %v127 = vand.u32 %v73, 4294901760
    %128 = vmatpush1.msra.mxu0 %v127
    %129 = vmatprep.subr.mxu0 0.0
    %v130 = vand.u32 %v72, 4294901760
    %131 = vmatpush1.msra.mxu0 %v130
    %132 = vmatprep.subr.mxu0 0.0
    %v133 = vand.u32 %v71, 4294901760
    %134 = vmatpush1.msra.mxu0 %v133
    %135 = vmatprep.subr.mxu0 0.0
    %v136 = vand.u32 %v70, 4294901760
    %137 = vmatpush1.msra.mxu0 %v136
    %138 = vmatprep.subr.mxu0 0.0
    %v139 = vand.u32 %v69, 4294901760
    %140 = vmatpush1.msra.mxu0 %v139
    %141 = vmatprep.subr.mxu0 0.0
    %v142 = vand.u32 %v68, 4294901760
    %143 = vmatpush1.msra.mxu0 %v142
    %144 = vmatprep.subr.mxu0 0.0
    %v145 = vand.u32 %v67, 4294901760
    %146 = vmatpush1.msra.mxu0 %v145
    %147 = vmatprep.subr.mxu0 0.0
    %v148 = vand.u32 %v66, 4294901760
    %149 = vmatpush1.msra.mxu0 %v148
    %150 = vmatprep.subr.mxu0 0.0
    %v151 = vand.u32 %v65, 4294901760
    %152 = vmatpush1.msra.mxu0 %v151
    %153 = vmatprep.subr.mxu0 0.0
    %v154 = vand.u32 %v64, 4294901760
    %155 = vmatpush1.msra.mxu0 %v154
    %156 = vmatprep.subr.mxu0 0.0
    %v157 = vand.u32 %v63, 4294901760
    %158 = vmatpush1.msra.mxu0 %v157
    %159 = vmatprep.subr.mxu0 0.0
    %v160 = vand.u32 %v62, 4294901760
    %161 = vmatpush1.msra.mxu0 %v160
    %162 = vmatprep.subr.mxu0 0.0
    %v163 = vand.u32 %v61, 4294901760
    %164 = vmatpush1.msra.mxu0 %v163
    %165 = vmatprep.subr.mxu0 0.0
    %v166 = vand.u32 %v60, 4294901760
    %167 = vmatpush1.msra.mxu0 %v166
    %168 = vmatprep.subr.mxu0 0.0
    %v169 = vand.u32 %v59, 4294901760
    %170 = vmatpush1.msra.mxu0 %v169
    %171 = vmatprep.subr.mxu0 0.0
    %v172 = vand.u32 %v90, 4294901760
    %173 = vmatpush2.msra.mxu0 %v172
    %174 = vmatprep.subr.mxu0 0.0
    %v175 = vand.u32 %v89, 4294901760
    %176 = vmatpush2.msra.mxu0 %v175
    %177 = vmatprep.subr.mxu0 0.0
    %v178 = vand.u32 %v88, 4294901760
    %179 = vmatpush2.msra.mxu0 %v178
    %180 = vmatprep.subr.mxu0 0.0
    %v181 = vand.u32 %v87, 4294901760
    %182 = vmatpush2.msra.mxu0 %v181
    %183 = vmatprep.subr.mxu0 0.0
    %v184 = vand.u32 %v86, 4294901760
    %185 = vmatpush2.msra.mxu0 %v184
    %186 = vmatprep.subr.mxu0 0.0
    %v187 = vand.u32 %v85, 4294901760
    %188 = vmatpush2.msra.mxu0 %v187
    %189 = vmatprep.subr.mxu0 0.0
    %v190 = vand.u32 %v84, 4294901760
    %191 = vmatpush2.msra.mxu0 %v190
    %192 = vmatprep.subr.mxu0 0.0
    %v193 = vand.u32 %v83, 4294901760
    %194 = vmatpush2.msra.mxu0 %v193
    %195 = vmatprep.subr.mxu0 0.0
    %v196 = vand.u32 %v82, 4294901760
    %197 = vmatpush2.msra.mxu0 %v196
    %198 = vmatprep.subr.mxu0 0.0
    %v199 = vand.u32 %v81, 4294901760
    %200 = vmatpush2.msra.mxu0 %v199
    %201 = vmatprep.subr.mxu0 0.0
    %v202 = vand.u32 %v80, 4294901760
    %203 = vmatpush2.msra.mxu0 %v202
    %204 = vmatprep.subr.mxu0 0.0
    %v205 = vand.u32 %v79, 4294901760
    %206 = vmatpush2.msra.mxu0 %v205
    %207 = vmatprep.subr.mxu0 0.0
    %v208 = vand.u32 %v78, 4294901760
    %209 = vmatpush2.msra.mxu0 %v208
    %210 = vmatprep.subr.mxu0 0.0
    %v211 = vand.u32 %v77, 4294901760
    %212 = vmatpush2.msra.mxu0 %v211
    %213 = vmatprep.subr.mxu0 0.0
    %v214 = vand.u32 %v76, 4294901760
    %215 = vmatpush2.msra.mxu0 %v214
    %216 = vmatprep.subr.mxu0 0.0
    %v217 = vand.u32 %v75, 4294901760
    %218 = vmatpush2.msra.mxu0 %v217
    %v219 = vand.u32 %v54, 4294901760
    %v220 = vsub.f32 %v54, %v219
    %v221 = vand.u32 %v220, 4294901760
    %v222 = vsub.f32 %v220, %v221
    %v223 = vand.u32 %v222, 4294901760
    %224 = vmatprep.mubr.f32.mxu0 %v223
    %v225 = vand.u32 %v52, 4294901760
    %v226 = vsub.f32 %v52, %v225
    %v227 = vand.u32 %v226, 4294901760
    %v228 = vsub.f32 %v226, %v227
    %v229 = vand.u32 %v228, 4294901760
    %230 = vmatmul.mubr.f32.gmra.mxu0 %v229
    %v231 = vpop.f32.mrf.mxu0
    %v232 = vadd.f32 0.0, %v231
    %v233 = vpop.f32.mrf.mxu0
    %234 = vdwg.mxu0
    %235 = vmatprep.subr.mxu0 0.0
    %v236 = vand.u32 %v74, 4294901760
    %v237 = vsub.f32 %v74, %v236
    %v238 = vand.u32 %v237, 4294901760
    %v239 = vsub.f32 %v237, %v238
    %v240 = vand.u32 %v239, 4294901760
    %241 = vmatpush1.msra.mxu0 %v240
    %242 = vmatprep.subr.mxu0 0.0
    %v243 = vand.u32 %v73, 4294901760
    %v244 = vsub.f32 %v73, %v243
    %v245 = vand.u32 %v244, 4294901760
    %v246 = vsub.f32 %v244, %v245
    %v247 = vand.u32 %v246, 4294901760
    %248 = vmatpush1.msra.mxu0 %v247
    %249 = vmatprep.subr.mxu0 0.0
    %v250 = vand.u32 %v72, 4294901760
    %v251 = vsub.f32 %v72, %v250
    %v252 = vand.u32 %v251, 4294901760
    %v253 = vsub.f32 %v251, %v252
    %v254 = vand.u32 %v253, 4294901760
    %255 = vmatpush1.msra.mxu0 %v254
    %256 = vmatprep.subr.mxu0 0.0
    %v257 = vand.u32 %v71, 4294901760
    %v258 = vsub.f32 %v71, %v257
    %v259 = vand.u32 %v258, 4294901760
    %v260 = vsub.f32 %v258, %v259
    %v261 = vand.u32 %v260, 4294901760
    %262 = vmatpush1.msra.mxu0 %v261
    %263 = vmatprep.subr.mxu0 0.0
    %v264 = vand.u32 %v70, 4294901760
    %v265 = vsub.f32 %v70, %v264
    %v266 = vand.u32 %v265, 4294901760
    %v267 = vsub.f32 %v265, %v266
    %v268 = vand.u32 %v267, 4294901760
    %269 = vmatpush1.msra.mxu0 %v268
    %270 = vmatprep.subr.mxu0 0.0
    %v271 = vand.u32 %v69, 4294901760
    %v272 = vsub.f32 %v69, %v271
    %v273 = vand.u32 %v272, 4294901760
    %v274 = vsub.f32 %v272, %v273
    %v275 = vand.u32 %v274, 4294901760
    %276 = vmatpush1.msra.mxu0 %v275
    %277 = vmatprep.subr.mxu0 0.0
    %v278 = vand.u32 %v68, 4294901760
    %v279 = vsub.f32 %v68, %v278
    %v280 = vand.u32 %v279, 4294901760
    %v281 = vsub.f32 %v279, %v280
    %v282 = vand.u32 %v281, 4294901760
    %283 = vmatpush1.msra.mxu0 %v282
    %284 = vmatprep.subr.mxu0 0.0
    %v285 = vand.u32 %v67, 4294901760
    %v286 = vsub.f32 %v67, %v285
    %v287 = vand.u32 %v286, 4294901760
    %v288 = vsub.f32 %v286, %v287
    %v289 = vand.u32 %v288, 4294901760
    %290 = vmatpush1.msra.mxu0 %v289
    %291 = vmatprep.subr.mxu0 0.0
    %v292 = vand.u32 %v66, 4294901760
    %v293 = vsub.f32 %v66, %v292
    %v294 = vand.u32 %v293, 4294901760
    %v295 = vsub.f32 %v293, %v294
    %v296 = vand.u32 %v295, 4294901760
    %297 = vmatpush1.msra.mxu0 %v296
    %298 = vmatprep.subr.mxu0 0.0
    %v299 = vand.u32 %v65, 4294901760
    %v300 = vsub.f32 %v65, %v299
    %v301 = vand.u32 %v300, 4294901760
    %v302 = vsub.f32 %v300, %v301
    %v303 = vand.u32 %v302, 4294901760
    %304 = vmatpush1.msra.mxu0 %v303
    %305 = vmatprep.subr.mxu0 0.0
    %v306 = vand.u32 %v64, 4294901760
    %v307 = vsub.f32 %v64, %v306
    %v308 = vand.u32 %v307, 4294901760
    %v309 = vsub.f32 %v307, %v308
    %v310 = vand.u32 %v309, 4294901760
    %311 = vmatpush1.msra.mxu0 %v310
    %312 = vmatprep.subr.mxu0 0.0
    %v313 = vand.u32 %v63, 4294901760
    %v314 = vsub.f32 %v63, %v313
    %v315 = vand.u32 %v314, 4294901760
    %v316 = vsub.f32 %v314, %v315
    %v317 = vand.u32 %v316, 4294901760
    %318 = vmatpush1.msra.mxu0 %v317
    %319 = vmatprep.subr.mxu0 0.0
    %v320 = vand.u32 %v62, 4294901760
    %v321 = vsub.f32 %v62, %v320
    %v322 = vand.u32 %v321, 4294901760
    %v323 = vsub.f32 %v321, %v322
    %v324 = vand.u32 %v323, 4294901760
    %325 = vmatpush1.msra.mxu0 %v324
    %326 = vmatprep.subr.mxu0 0.0
    %v327 = vand.u32 %v61, 4294901760
    %v328 = vsub.f32 %v61, %v327
    %v329 = vand.u32 %v328, 4294901760
    %v330 = vsub.f32 %v328, %v329
    %v331 = vand.u32 %v330, 4294901760
    %332 = vmatpush1.msra.mxu0 %v331
    %333 = vmatprep.subr.mxu0 0.0
    %v334 = vand.u32 %v60, 4294901760
    %v335 = vsub.f32 %v60, %v334
    %v336 = vand.u32 %v335, 4294901760
    %v337 = vsub.f32 %v335, %v336
    %v338 = vand.u32 %v337, 4294901760
    %339 = vmatpush1.msra.mxu0 %v338
    %340 = vmatprep.subr.mxu0 0.0
    %v341 = vand.u32 %v59, 4294901760
    %v342 = vsub.f32 %v59, %v341
    %v343 = vand.u32 %v342, 4294901760
    %v344 = vsub.f32 %v342, %v343
    %v345 = vand.u32 %v344, 4294901760
    %346 = vmatpush1.msra.mxu0 %v345
    %347 = vmatprep.subr.mxu0 0.0
    %v348 = vand.u32 %v90, 4294901760
    %v349 = vsub.f32 %v90, %v348
    %v350 = vand.u32 %v349, 4294901760
    %v351 = vsub.f32 %v349, %v350
    %v352 = vand.u32 %v351, 4294901760
    %353 = vmatpush2.msra.mxu0 %v352
    %354 = vmatprep.subr.mxu0 0.0
    %v355 = vand.u32 %v89, 4294901760
    %v356 = vsub.f32 %v89, %v355
    %v357 = vand.u32 %v356, 4294901760
    %v358 = vsub.f32 %v356, %v357
    %v359 = vand.u32 %v358, 4294901760
    %360 = vmatpush2.msra.mxu0 %v359
    %361 = vmatprep.subr.mxu0 0.0
    %v362 = vand.u32 %v88, 4294901760
    %v363 = vsub.f32 %v88, %v362
    %v364 = vand.u32 %v363, 4294901760
    %v365 = vsub.f32 %v363, %v364
    %v366 = vand.u32 %v365, 4294901760
    %367 = vmatpush2.msra.mxu0 %v366
    %368 = vmatprep.subr.mxu0 0.0
    %v369 = vand.u32 %v87, 4294901760
    %v370 = vsub.f32 %v87, %v369
    %v371 = vand.u32 %v370, 4294901760
    %v372 = vsub.f32 %v370, %v371
    %v373 = vand.u32 %v372, 4294901760
    %374 = vmatpush2.msra.mxu0 %v373
    %375 = vmatprep.subr.mxu0 0.0
    %v376 = vand.u32 %v86, 4294901760
    %v377 = vsub.f32 %v86, %v376
    %v378 = vand.u32 %v377, 4294901760
    %v379 = vsub.f32 %v377, %v378
    %v380 = vand.u32 %v379, 4294901760
    %381 = vmatpush2.msra.mxu0 %v380
    %382 = vmatprep.subr.mxu0 0.0
    %v383 = vand.u32 %v85, 4294901760
    %v384 = vsub.f32 %v85, %v383
    %v385 = vand.u32 %v384, 4294901760
    %v386 = vsub.f32 %v384, %v385
    %v387 = vand.u32 %v386, 4294901760
    %388 = vmatpush2.msra.mxu0 %v387
    %389 = vmatprep.subr.mxu0 0.0
    %v390 = vand.u32 %v84, 4294901760
    %v391 = vsub.f32 %v84, %v390
    %v392 = vand.u32 %v391, 4294901760
    %v393 = vsub.f32 %v391, %v392
    %v394 = vand.u32 %v393, 4294901760
    %395 = vmatpush2.msra.mxu0 %v394
    %396 = vmatprep.subr.mxu0 0.0
    %v397 = vand.u32 %v83, 4294901760
    %v398 = vsub.f32 %v83, %v397
    %v399 = vand.u32 %v398, 4294901760
    %v400 = vsub.f32 %v398, %v399
    %v401 = vand.u32 %v400, 4294901760
    %402 = vmatpush2.msra.mxu0 %v401
    %403 = vmatprep.subr.mxu0 0.0
    %v404 = vand.u32 %v82, 4294901760
    %v405 = vsub.f32 %v82, %v404
    %v406 = vand.u32 %v405, 4294901760
    %v407 = vsub.f32 %v405, %v406
    %v408 = vand.u32 %v407, 4294901760
    %409 = vmatpush2.msra.mxu0 %v408
    %410 = vmatprep.subr.mxu0 0.0
    %v411 = vand.u32 %v81, 4294901760
    %v412 = vsub.f32 %v81, %v411
    %v413 = vand.u32 %v412, 4294901760
    %v414 = vsub.f32 %v412, %v413
    %v415 = vand.u32 %v414, 4294901760
    %416 = vmatpush2.msra.mxu0 %v415
    %417 = vmatprep.subr.mxu0 0.0
    %v418 = vand.u32 %v80, 4294901760
    %v419 = vsub.f32 %v80, %v418
    %v420 = vand.u32 %v419, 4294901760
    %v421 = vsub.f32 %v419, %v420
    %v422 = vand.u32 %v421, 4294901760
    %423 = vmatpush2.msra.mxu0 %v422
    %424 = vmatprep.subr.mxu0 0.0
    %v425 = vand.u32 %v79, 4294901760
    %v426 = vsub.f32 %v79, %v425
    %v427 = vand.u32 %v426, 4294901760
    %v428 = vsub.f32 %v426, %v427
    %v429 = vand.u32 %v428, 4294901760
    %430 = vmatpush2.msra.mxu0 %v429
    %431 = vmatprep.subr.mxu0 0.0
    %v432 = vand.u32 %v78, 4294901760
    %v433 = vsub.f32 %v78, %v432
    %v434 = vand.u32 %v433, 4294901760
    %v435 = vsub.f32 %v433, %v434
    %v436 = vand.u32 %v435, 4294901760
    %437 = vmatpush2.msra.mxu0 %v436
    %438 = vmatprep.subr.mxu0 0.0
    %v439 = vand.u32 %v77, 4294901760
    %v440 = vsub.f32 %v77, %v439
    %v441 = vand.u32 %v440, 4294901760
    %v442 = vsub.f32 %v440, %v441
    %v443 = vand.u32 %v442, 4294901760
    %444 = vmatpush2.msra.mxu0 %v443
    %445 = vmatprep.subr.mxu0 0.0
    %v446 = vand.u32 %v76, 4294901760
    %v447 = vsub.f32 %v76, %v446
    %v448 = vand.u32 %v447, 4294901760
    %v449 = vsub.f32 %v447, %v448
    %v450 = vand.u32 %v449, 4294901760
    %451 = vmatpush2.msra.mxu0 %v450
    %452 = vmatprep.subr.mxu0 0.0
    %v453 = vand.u32 %v75, 4294901760
    %v454 = vsub.f32 %v75, %v453
    %v455 = vand.u32 %v454, 4294901760
    %v456 = vsub.f32 %v454, %v455
    %v457 = vand.u32 %v456, 4294901760
    %458 = vmatpush2.msra.mxu0 %v457
    %v459 = vand.u32 %v54, 4294901760
    %460 = vmatprep.mubr.f32.mxu0 %v459
    %v461 = vand.u32 %v52, 4294901760
    %462 = vmatmul.mubr.f32.gmra.mxu0 %v461
    %v463 = vpop.f32.mrf.mxu0
    %v464 = vadd.f32 %v232, %v463
    %v465 = vpop.f32.mrf.mxu0
    %466 = vdwg.mxu0
    %467 = vmatprep.subr.mxu0 0.0
    %v468 = vand.u32 %v74, 4294901760
    %v469 = vsub.f32 %v74, %v468
    %470 = vmatpush1.msra.mxu0 %v469
    %471 = vmatprep.subr.mxu0 0.0
    %v472 = vand.u32 %v73, 4294901760
    %v473 = vsub.f32 %v73, %v472
    %474 = vmatpush1.msra.mxu0 %v473
    %475 = vmatprep.subr.mxu0 0.0
    %v476 = vand.u32 %v72, 4294901760
    %v477 = vsub.f32 %v72, %v476
    %478 = vmatpush1.msra.mxu0 %v477
    %479 = vmatprep.subr.mxu0 0.0
    %v480 = vand.u32 %v71, 4294901760
    %v481 = vsub.f32 %v71, %v480
    %482 = vmatpush1.msra.mxu0 %v481
    %483 = vmatprep.subr.mxu0 0.0
    %v484 = vand.u32 %v70, 4294901760
    %v485 = vsub.f32 %v70, %v484
    %486 = vmatpush1.msra.mxu0 %v485
    %487 = vmatprep.subr.mxu0 0.0
    %v488 = vand.u32 %v69, 4294901760
    %v489 = vsub.f32 %v69, %v488
    %490 = vmatpush1.msra.mxu0 %v489
    %491 = vmatprep.subr.mxu0 0.0
    %v492 = vand.u32 %v68, 4294901760
    %v493 = vsub.f32 %v68, %v492
    %494 = vmatpush1.msra.mxu0 %v493
    %495 = vmatprep.subr.mxu0 0.0
    %v496 = vand.u32 %v67, 4294901760
    %v497 = vsub.f32 %v67, %v496
    %498 = vmatpush1.msra.mxu0 %v497
    %499 = vmatprep.subr.mxu0 0.0
    %v500 = vand.u32 %v66, 4294901760
    %v501 = vsub.f32 %v66, %v500
    %502 = vmatpush1.msra.mxu0 %v501
    %503 = vmatprep.subr.mxu0 0.0
    %v504 = vand.u32 %v65, 4294901760
    %v505 = vsub.f32 %v65, %v504
    %506 = vmatpush1.msra.mxu0 %v505
    %507 = vmatprep.subr.mxu0 0.0
    %v508 = vand.u32 %v64, 4294901760
    %v509 = vsub.f32 %v64, %v508
    %510 = vmatpush1.msra.mxu0 %v509
    %511 = vmatprep.subr.mxu0 0.0
    %v512 = vand.u32 %v63, 4294901760
    %v513 = vsub.f32 %v63, %v512
    %514 = vmatpush1.msra.mxu0 %v513
    %515 = vmatprep.subr.mxu0 0.0
    %v516 = vand.u32 %v62, 4294901760
    %v517 = vsub.f32 %v62, %v516
    %518 = vmatpush1.msra.mxu0 %v517
    %519 = vmatprep.subr.mxu0 0.0
    %v520 = vand.u32 %v61, 4294901760
    %v521 = vsub.f32 %v61, %v520
    %522 = vmatpush1.msra.mxu0 %v521
    %523 = vmatprep.subr.mxu0 0.0
    %v524 = vand.u32 %v60, 4294901760
    %v525 = vsub.f32 %v60, %v524
    %526 = vmatpush1.msra.mxu0 %v525
    %527 = vmatprep.subr.mxu0 0.0
    %v528 = vand.u32 %v59, 4294901760
    %v529 = vsub.f32 %v59, %v528
    %530 = vmatpush1.msra.mxu0 %v529
    %531 = vmatprep.subr.mxu0 0.0
    %v532 = vand.u32 %v90, 4294901760
    %v533 = vsub.f32 %v90, %v532
    %534 = vmatpush2.msra.mxu0 %v533
    %535 = vmatprep.subr.mxu0 0.0
    %v536 = vand.u32 %v89, 4294901760
    %v537 = vsub.f32 %v89, %v536
    %538 = vmatpush2.msra.mxu0 %v537
    %539 = vmatprep.subr.mxu0 0.0
    %v540 = vand.u32 %v88, 4294901760
    %v541 = vsub.f32 %v88, %v540
    %542 = vmatpush2.msra.mxu0 %v541
    %543 = vmatprep.subr.mxu0 0.0
    %v544 = vand.u32 %v87, 4294901760
    %v545 = vsub.f32 %v87, %v544
    %546 = vmatpush2.msra.mxu0 %v545
    %547 = vmatprep.subr.mxu0 0.0
    %v548 = vand.u32 %v86, 4294901760
    %v549 = vsub.f32 %v86, %v548
    %550 = vmatpush2.msra.mxu0 %v549
    %551 = vmatprep.subr.mxu0 0.0
    %v552 = vand.u32 %v85, 4294901760
    %v553 = vsub.f32 %v85, %v552
    %554 = vmatpush2.msra.mxu0 %v553
    %555 = vmatprep.subr.mxu0 0.0
    %v556 = vand.u32 %v84, 4294901760
    %v557 = vsub.f32 %v84, %v556
    %558 = vmatpush2.msra.mxu0 %v557
    %559 = vmatprep.subr.mxu0 0.0
    %v560 = vand.u32 %v83, 4294901760
    %v561 = vsub.f32 %v83, %v560
    %562 = vmatpush2.msra.mxu0 %v561
    %563 = vmatprep.subr.mxu0 0.0
    %v564 = vand.u32 %v82, 4294901760
    %v565 = vsub.f32 %v82, %v564
    %566 = vmatpush2.msra.mxu0 %v565
    %567 = vmatprep.subr.mxu0 0.0
    %v568 = vand.u32 %v81, 4294901760
    %v569 = vsub.f32 %v81, %v568
    %570 = vmatpush2.msra.mxu0 %v569
    %571 = vmatprep.subr.mxu0 0.0
    %v572 = vand.u32 %v80, 4294901760
    %v573 = vsub.f32 %v80, %v572
    %574 = vmatpush2.msra.mxu0 %v573
    %575 = vmatprep.subr.mxu0 0.0
    %v576 = vand.u32 %v79, 4294901760
    %v577 = vsub.f32 %v79, %v576
    %578 = vmatpush2.msra.mxu0 %v577
    %579 = vmatprep.subr.mxu0 0.0
    %v580 = vand.u32 %v78, 4294901760
    %v581 = vsub.f32 %v78, %v580
    %582 = vmatpush2.msra.mxu0 %v581
    %583 = vmatprep.subr.mxu0 0.0
    %v584 = vand.u32 %v77, 4294901760
    %v585 = vsub.f32 %v77, %v584
    %586 = vmatpush2.msra.mxu0 %v585
    %587 = vmatprep.subr.mxu0 0.0
    %v588 = vand.u32 %v76, 4294901760
    %v589 = vsub.f32 %v76, %v588
    %590 = vmatpush2.msra.mxu0 %v589
    %591 = vmatprep.subr.mxu0 0.0
    %v592 = vand.u32 %v75, 4294901760
    %v593 = vsub.f32 %v75, %v592
    %594 = vmatpush2.msra.mxu0 %v593
    %v595 = vand.u32 %v54, 4294901760
    %v596 = vsub.f32 %v54, %v595
    %597 = vmatprep.mubr.f32.mxu0 %v596
    %v598 = vand.u32 %v52, 4294901760
    %v599 = vsub.f32 %v52, %v598
    %600 = vmatmul.mubr.f32.gmra.mxu0 %v599
    %v601 = vpop.f32.mrf.mxu0
    %v602 = vadd.f32 %v464, %v601
    %v603 = vpop.f32.mrf.mxu0
    %604 = vdwg.mxu0
    %605 = vmatprep.subr.mxu0 0.0
    %v606 = vand.u32 %v74, 4294901760
    %607 = vmatpush1.msra.mxu0 %v606
    %608 = vmatprep.subr.mxu0 0.0
    %v609 = vand.u32 %v73, 4294901760
    %610 = vmatpush1.msra.mxu0 %v609
    %611 = vmatprep.subr.mxu0 0.0
    %v612 = vand.u32 %v72, 4294901760
    %613 = vmatpush1.msra.mxu0 %v612
    %614 = vmatprep.subr.mxu0 0.0
    %v615 = vand.u32 %v71, 4294901760
    %616 = vmatpush1.msra.mxu0 %v615
    %617 = vmatprep.subr.mxu0 0.0
    %v618 = vand.u32 %v70, 4294901760
    %619 = vmatpush1.msra.mxu0 %v618
    %620 = vmatprep.subr.mxu0 0.0
    %v621 = vand.u32 %v69, 4294901760
    %622 = vmatpush1.msra.mxu0 %v621
    %623 = vmatprep.subr.mxu0 0.0
    %v624 = vand.u32 %v68, 4294901760
    %625 = vmatpush1.msra.mxu0 %v624
    %626 = vmatprep.subr.mxu0 0.0
    %v627 = vand.u32 %v67, 4294901760
    %628 = vmatpush1.msra.mxu0 %v627
    %629 = vmatprep.subr.mxu0 0.0
    %v630 = vand.u32 %v66, 4294901760
    %631 = vmatpush1.msra.mxu0 %v630
    %632 = vmatprep.subr.mxu0 0.0
    %v633 = vand.u32 %v65, 4294901760
    %634 = vmatpush1.msra.mxu0 %v633
    %635 = vmatprep.subr.mxu0 0.0
    %v636 = vand.u32 %v64, 4294901760
    %637 = vmatpush1.msra.mxu0 %v636
    %638 = vmatprep.subr.mxu0 0.0
    %v639 = vand.u32 %v63, 4294901760
    %640 = vmatpush1.msra.mxu0 %v639
    %641 = vmatprep.subr.mxu0 0.0
    %v642 = vand.u32 %v62, 4294901760
    %643 = vmatpush1.msra.mxu0 %v642
    %644 = vmatprep.subr.mxu0 0.0
    %v645 = vand.u32 %v61, 4294901760
    %646 = vmatpush1.msra.mxu0 %v645
    %647 = vmatprep.subr.mxu0 0.0
    %v648 = vand.u32 %v60, 4294901760
    %649 = vmatpush1.msra.mxu0 %v648
    %650 = vmatprep.subr.mxu0 0.0
    %v651 = vand.u32 %v59, 4294901760
    %652 = vmatpush1.msra.mxu0 %v651
    %653 = vmatprep.subr.mxu0 0.0
    %v654 = vand.u32 %v90, 4294901760
    %655 = vmatpush2.msra.mxu0 %v654
    %656 = vmatprep.subr.mxu0 0.0
    %v657 = vand.u32 %v89, 4294901760
    %658 = vmatpush2.msra.mxu0 %v657
    %659 = vmatprep.subr.mxu0 0.0
    %v660 = vand.u32 %v88, 4294901760
    %661 = vmatpush2.msra.mxu0 %v660
    %662 = vmatprep.subr.mxu0 0.0
    %v663 = vand.u32 %v87, 4294901760
    %664 = vmatpush2.msra.mxu0 %v663
    %665 = vmatprep.subr.mxu0 0.0
    %v666 = vand.u32 %v86, 4294901760
    %667 = vmatpush2.msra.mxu0 %v666
    %668 = vmatprep.subr.mxu0 0.0
    %v669 = vand.u32 %v85, 4294901760
    %670 = vmatpush2.msra.mxu0 %v669
    %671 = vmatprep.subr.mxu0 0.0
    %v672 = vand.u32 %v84, 4294901760
    %673 = vmatpush2.msra.mxu0 %v672
    %674 = vmatprep.subr.mxu0 0.0
    %v675 = vand.u32 %v83, 4294901760
    %676 = vmatpush2.msra.mxu0 %v675
    %677 = vmatprep.subr.mxu0 0.0
    %v678 = vand.u32 %v82, 4294901760
    %679 = vmatpush2.msra.mxu0 %v678
    %680 = vmatprep.subr.mxu0 0.0
    %v681 = vand.u32 %v81, 4294901760
    %682 = vmatpush2.msra.mxu0 %v681
    %683 = vmatprep.subr.mxu0 0.0
    %v684 = vand.u32 %v80, 4294901760
    %685 = vmatpush2.msra.mxu0 %v684
    %686 = vmatprep.subr.mxu0 0.0
    %v687 = vand.u32 %v79, 4294901760
    %688 = vmatpush2.msra.mxu0 %v687
    %689 = vmatprep.subr.mxu0 0.0
    %v690 = vand.u32 %v78, 4294901760
    %691 = vmatpush2.msra.mxu0 %v690
    %692 = vmatprep.subr.mxu0 0.0
    %v693 = vand.u32 %v77, 4294901760
    %694 = vmatpush2.msra.mxu0 %v693
    %695 = vmatprep.subr.mxu0 0.0
    %v696 = vand.u32 %v76, 4294901760
    %697 = vmatpush2.msra.mxu0 %v696
    %698 = vmatprep.subr.mxu0 0.0
    %v699 = vand.u32 %v75, 4294901760
    %700 = vmatpush2.msra.mxu0 %v699
    %v701 = vand.u32 %v54, 4294901760
    %v702 = vsub.f32 %v54, %v701
    %v703 = vand.u32 %v702, 4294901760
    %704 = vmatprep.mubr.f32.mxu0 %v703
    %v705 = vand.u32 %v52, 4294901760
    %v706 = vsub.f32 %v52, %v705
    %v707 = vand.u32 %v706, 4294901760
    %708 = vmatmul.mubr.f32.gmra.mxu0 %v707
    %v709 = vpop.f32.mrf.mxu0
    %v710 = vadd.f32 %v602, %v709
    %v711 = vpop.f32.mrf.mxu0
    %712 = vdwg.mxu0
    %713 = vmatprep.subr.mxu0 0.0
    %v714 = vand.u32 %v74, 4294901760
    %v715 = vsub.f32 %v74, %v714
    %v716 = vand.u32 %v715, 4294901760
    %717 = vmatpush1.msra.mxu0 %v716
    %718 = vmatprep.subr.mxu0 0.0
    %v719 = vand.u32 %v73, 4294901760
    %v720 = vsub.f32 %v73, %v719
    %v721 = vand.u32 %v720, 4294901760
    %722 = vmatpush1.msra.mxu0 %v721
    %723 = vmatprep.subr.mxu0 0.0
    %v724 = vand.u32 %v72, 4294901760
    %v725 = vsub.f32 %v72, %v724
    %v726 = vand.u32 %v725, 4294901760
    %727 = vmatpush1.msra.mxu0 %v726
    %728 = vmatprep.subr.mxu0 0.0
    %v729 = vand.u32 %v71, 4294901760
    %v730 = vsub.f32 %v71, %v729
    %v731 = vand.u32 %v730, 4294901760
    %732 = vmatpush1.msra.mxu0 %v731
    %733 = vmatprep.subr.mxu0 0.0
    %v734 = vand.u32 %v70, 4294901760
    %v735 = vsub.f32 %v70, %v734
    %v736 = vand.u32 %v735, 4294901760
    %737 = vmatpush1.msra.mxu0 %v736
    %738 = vmatprep.subr.mxu0 0.0
    %v739 = vand.u32 %v69, 4294901760
    %v740 = vsub.f32 %v69, %v739
    %v741 = vand.u32 %v740, 4294901760
    %742 = vmatpush1.msra.mxu0 %v741
    %743 = vmatprep.subr.mxu0 0.0
    %v744 = vand.u32 %v68, 4294901760
    %v745 = vsub.f32 %v68, %v744
    %v746 = vand.u32 %v745, 4294901760
    %747 = vmatpush1.msra.mxu0 %v746
    %748 = vmatprep.subr.mxu0 0.0
    %v749 = vand.u32 %v67, 4294901760
    %v750 = vsub.f32 %v67, %v749
    %v751 = vand.u32 %v750, 4294901760
    %752 = vmatpush1.msra.mxu0 %v751
    %753 = vmatprep.subr.mxu0 0.0
    %v754 = vand.u32 %v66, 4294901760
    %v755 = vsub.f32 %v66, %v754
    %v756 = vand.u32 %v755, 4294901760
    %757 = vmatpush1.msra.mxu0 %v756
    %758 = vmatprep.subr.mxu0 0.0
    %v759 = vand.u32 %v65, 4294901760
    %v760 = vsub.f32 %v65, %v759
    %v761 = vand.u32 %v760, 4294901760
    %762 = vmatpush1.msra.mxu0 %v761
    %763 = vmatprep.subr.mxu0 0.0
    %v764 = vand.u32 %v64, 4294901760
    %v765 = vsub.f32 %v64, %v764
    %v766 = vand.u32 %v765, 4294901760
    %767 = vmatpush1.msra.mxu0 %v766
    %768 = vmatprep.subr.mxu0 0.0
    %v769 = vand.u32 %v63, 4294901760
    %v770 = vsub.f32 %v63, %v769
    %v771 = vand.u32 %v770, 4294901760
    %772 = vmatpush1.msra.mxu0 %v771
    %773 = vmatprep.subr.mxu0 0.0
    %v774 = vand.u32 %v62, 4294901760
    %v775 = vsub.f32 %v62, %v774
    %v776 = vand.u32 %v775, 4294901760
    %777 = vmatpush1.msra.mxu0 %v776
    %778 = vmatprep.subr.mxu0 0.0
    %v779 = vand.u32 %v61, 4294901760
    %v780 = vsub.f32 %v61, %v779
    %v781 = vand.u32 %v780, 4294901760
    %782 = vmatpush1.msra.mxu0 %v781
    %783 = vmatprep.subr.mxu0 0.0
    %v784 = vand.u32 %v60, 4294901760
    %v785 = vsub.f32 %v60, %v784
    %v786 = vand.u32 %v785, 4294901760
    %787 = vmatpush1.msra.mxu0 %v786
    %788 = vmatprep.subr.mxu0 0.0
    %v789 = vand.u32 %v59, 4294901760
    %v790 = vsub.f32 %v59, %v789
    %v791 = vand.u32 %v790, 4294901760
    %792 = vmatpush1.msra.mxu0 %v791
    %793 = vmatprep.subr.mxu0 0.0
    %v794 = vand.u32 %v90, 4294901760
    %v795 = vsub.f32 %v90, %v794
    %v796 = vand.u32 %v795, 4294901760
    %797 = vmatpush2.msra.mxu0 %v796
    %798 = vmatprep.subr.mxu0 0.0
    %v799 = vand.u32 %v89, 4294901760
    %v800 = vsub.f32 %v89, %v799
    %v801 = vand.u32 %v800, 4294901760
    %802 = vmatpush2.msra.mxu0 %v801
    %803 = vmatprep.subr.mxu0 0.0
    %v804 = vand.u32 %v88, 4294901760
    %v805 = vsub.f32 %v88, %v804
    %v806 = vand.u32 %v805, 4294901760
    %807 = vmatpush2.msra.mxu0 %v806
    %808 = vmatprep.subr.mxu0 0.0
    %v809 = vand.u32 %v87, 4294901760
    %v810 = vsub.f32 %v87, %v809
    %v811 = vand.u32 %v810, 4294901760
    %812 = vmatpush2.msra.mxu0 %v811
    %813 = vmatprep.subr.mxu0 0.0
    %v814 = vand.u32 %v86, 4294901760
    %v815 = vsub.f32 %v86, %v814
    %v816 = vand.u32 %v815, 4294901760
    %817 = vmatpush2.msra.mxu0 %v816
    %818 = vmatprep.subr.mxu0 0.0
    %v819 = vand.u32 %v85, 4294901760
    %v820 = vsub.f32 %v85, %v819
    %v821 = vand.u32 %v820, 4294901760
    %822 = vmatpush2.msra.mxu0 %v821
    %823 = vmatprep.subr.mxu0 0.0
    %v824 = vand.u32 %v84, 4294901760
    %v825 = vsub.f32 %v84, %v824
    %v826 = vand.u32 %v825, 4294901760
    %827 = vmatpush2.msra.mxu0 %v826
    %828 = vmatprep.subr.mxu0 0.0
    %v829 = vand.u32 %v83, 4294901760
    %v830 = vsub.f32 %v83, %v829
    %v831 = vand.u32 %v830, 4294901760
    %832 = vmatpush2.msra.mxu0 %v831
    %833 = vmatprep.subr.mxu0 0.0
    %v834 = vand.u32 %v82, 4294901760
    %v835 = vsub.f32 %v82, %v834
    %v836 = vand.u32 %v835, 4294901760
    %837 = vmatpush2.msra.mxu0 %v836
    %838 = vmatprep.subr.mxu0 0.0
    %v839 = vand.u32 %v81, 4294901760
    %v840 = vsub.f32 %v81, %v839
    %v841 = vand.u32 %v840, 4294901760
    %842 = vmatpush2.msra.mxu0 %v841
    %843 = vmatprep.subr.mxu0 0.0
    %v844 = vand.u32 %v80, 4294901760
    %v845 = vsub.f32 %v80, %v844
    %v846 = vand.u32 %v845, 4294901760
    %847 = vmatpush2.msra.mxu0 %v846
    %848 = vmatprep.subr.mxu0 0.0
    %v849 = vand.u32 %v79, 4294901760
    %v850 = vsub.f32 %v79, %v849
    %v851 = vand.u32 %v850, 4294901760
    %852 = vmatpush2.msra.mxu0 %v851
    %853 = vmatprep.subr.mxu0 0.0
    %v854 = vand.u32 %v78, 4294901760
    %v855 = vsub.f32 %v78, %v854
    %v856 = vand.u32 %v855, 4294901760
    %857 = vmatpush2.msra.mxu0 %v856
    %858 = vmatprep.subr.mxu0 0.0
    %v859 = vand.u32 %v77, 4294901760
    %v860 = vsub.f32 %v77, %v859
    %v861 = vand.u32 %v860, 4294901760
    %862 = vmatpush2.msra.mxu0 %v861
    %863 = vmatprep.subr.mxu0 0.0
    %v864 = vand.u32 %v76, 4294901760
    %v865 = vsub.f32 %v76, %v864
    %v866 = vand.u32 %v865, 4294901760
    %867 = vmatpush2.msra.mxu0 %v866
    %868 = vmatprep.subr.mxu0 0.0
    %v869 = vand.u32 %v75, 4294901760
    %v870 = vsub.f32 %v75, %v869
    %v871 = vand.u32 %v870, 4294901760
    %872 = vmatpush2.msra.mxu0 %v871
    %v873 = vand.u32 %v54, 4294901760
    %874 = vmatprep.mubr.f32.mxu0 %v873
    %v875 = vand.u32 %v52, 4294901760
    %876 = vmatmul.mubr.f32.gmra.mxu0 %v875
    %v877 = vpop.f32.mrf.mxu0
    %v878 = vadd.f32 %v710, %v877
    %v879 = vpop.f32.mrf.mxu0
    %880 = vdwg.mxu0
    %881 = vmatprep.subr.mxu0 0.0
    %v882 = vand.u32 %v74, 4294901760
    %883 = vmatpush1.msra.mxu0 %v882
    %884 = vmatprep.subr.mxu0 0.0
    %v885 = vand.u32 %v73, 4294901760
    %886 = vmatpush1.msra.mxu0 %v885
    %887 = vmatprep.subr.mxu0 0.0
    %v888 = vand.u32 %v72, 4294901760
    %889 = vmatpush1.msra.mxu0 %v888
    %890 = vmatprep.subr.mxu0 0.0
    %v891 = vand.u32 %v71, 4294901760
    %892 = vmatpush1.msra.mxu0 %v891
    %893 = vmatprep.subr.mxu0 0.0
    %v894 = vand.u32 %v70, 4294901760
    %895 = vmatpush1.msra.mxu0 %v894
    %896 = vmatprep.subr.mxu0 0.0
    %v897 = vand.u32 %v69, 4294901760
    %898 = vmatpush1.msra.mxu0 %v897
    %899 = vmatprep.subr.mxu0 0.0
    %v900 = vand.u32 %v68, 4294901760
    %901 = vmatpush1.msra.mxu0 %v900
    %902 = vmatprep.subr.mxu0 0.0
    %v903 = vand.u32 %v67, 4294901760
    %904 = vmatpush1.msra.mxu0 %v903
    %905 = vmatprep.subr.mxu0 0.0
    %v906 = vand.u32 %v66, 4294901760
    %907 = vmatpush1.msra.mxu0 %v906
    %908 = vmatprep.subr.mxu0 0.0
    %v909 = vand.u32 %v65, 4294901760
    %910 = vmatpush1.msra.mxu0 %v909
    %911 = vmatprep.subr.mxu0 0.0
    %v912 = vand.u32 %v64, 4294901760
    %913 = vmatpush1.msra.mxu0 %v912
    %914 = vmatprep.subr.mxu0 0.0
    %v915 = vand.u32 %v63, 4294901760
    %916 = vmatpush1.msra.mxu0 %v915
    %917 = vmatprep.subr.mxu0 0.0
    %v918 = vand.u32 %v62, 4294901760
    %919 = vmatpush1.msra.mxu0 %v918
    %920 = vmatprep.subr.mxu0 0.0
    %v921 = vand.u32 %v61, 4294901760
    %922 = vmatpush1.msra.mxu0 %v921
    %923 = vmatprep.subr.mxu0 0.0
    %v924 = vand.u32 %v60, 4294901760
    %925 = vmatpush1.msra.mxu0 %v924
    %926 = vmatprep.subr.mxu0 0.0
    %v927 = vand.u32 %v59, 4294901760
    %928 = vmatpush1.msra.mxu0 %v927
    %929 = vmatprep.subr.mxu0 0.0
    %v930 = vand.u32 %v90, 4294901760
    %931 = vmatpush2.msra.mxu0 %v930
    %932 = vmatprep.subr.mxu0 0.0
    %v933 = vand.u32 %v89, 4294901760
    %934 = vmatpush2.msra.mxu0 %v933
    %935 = vmatprep.subr.mxu0 0.0
    %v936 = vand.u32 %v88, 4294901760
    %937 = vmatpush2.msra.mxu0 %v936
    %938 = vmatprep.subr.mxu0 0.0
    %v939 = vand.u32 %v87, 4294901760
    %940 = vmatpush2.msra.mxu0 %v939
    %941 = vmatprep.subr.mxu0 0.0
    %v942 = vand.u32 %v86, 4294901760
    %943 = vmatpush2.msra.mxu0 %v942
    %944 = vmatprep.subr.mxu0 0.0
    %v945 = vand.u32 %v85, 4294901760
    %946 = vmatpush2.msra.mxu0 %v945
    %947 = vmatprep.subr.mxu0 0.0
    %v948 = vand.u32 %v84, 4294901760
    %949 = vmatpush2.msra.mxu0 %v948
    %950 = vmatprep.subr.mxu0 0.0
    %v951 = vand.u32 %v83, 4294901760
    %952 = vmatpush2.msra.mxu0 %v951
    %953 = vmatprep.subr.mxu0 0.0
    %v954 = vand.u32 %v82, 4294901760
    %955 = vmatpush2.msra.mxu0 %v954
    %956 = vmatprep.subr.mxu0 0.0
    %v957 = vand.u32 %v81, 4294901760
    %958 = vmatpush2.msra.mxu0 %v957
    %959 = vmatprep.subr.mxu0 0.0
    %v960 = vand.u32 %v80, 4294901760
    %961 = vmatpush2.msra.mxu0 %v960
    %962 = vmatprep.subr.mxu0 0.0
    %v963 = vand.u32 %v79, 4294901760
    %964 = vmatpush2.msra.mxu0 %v963
    %965 = vmatprep.subr.mxu0 0.0
    %v966 = vand.u32 %v78, 4294901760
    %967 = vmatpush2.msra.mxu0 %v966
    %968 = vmatprep.subr.mxu0 0.0
    %v969 = vand.u32 %v77, 4294901760
    %970 = vmatpush2.msra.mxu0 %v969
    %971 = vmatprep.subr.mxu0 0.0
    %v972 = vand.u32 %v76, 4294901760
    %973 = vmatpush2.msra.mxu0 %v972
    %974 = vmatprep.subr.mxu0 0.0
    %v975 = vand.u32 %v75, 4294901760
    %976 = vmatpush2.msra.mxu0 %v975
    %v977 = vand.u32 %v54, 4294901760
    %978 = vmatprep.mubr.f32.mxu0 %v977
    %v979 = vand.u32 %v52, 4294901760
    %980 = vmatmul.mubr.f32.gmra.mxu0 %v979
    %v981 = vpop.f32.mrf.mxu0
    %v982 = vadd.f32 %v878, %v981
    %v983 = vpop.f32.mrf.mxu0
    %984 = vdwg.mxu0
    %985 = vmatprep.subr.mxu0 0.0
    %v986 = vand.u32 %v106, 4294901760
    %987 = vmatpush1.msra.mxu0 %v986
    %988 = vmatprep.subr.mxu0 0.0
    %v989 = vand.u32 %v105, 4294901760
    %990 = vmatpush1.msra.mxu0 %v989
    %991 = vmatprep.subr.mxu0 0.0
    %v992 = vand.u32 %v104, 4294901760
    %993 = vmatpush1.msra.mxu0 %v992
    %994 = vmatprep.subr.mxu0 0.0
    %v995 = vand.u32 %v103, 4294901760
    %996 = vmatpush1.msra.mxu0 %v995
    %997 = vmatprep.subr.mxu0 0.0
    %v998 = vand.u32 %v102, 4294901760
    %999 = vmatpush1.msra.mxu0 %v998
    %1000 = vmatprep.subr.mxu0 0.0
    %v1001 = vand.u32 %v101, 4294901760
    %1002 = vmatpush1.msra.mxu0 %v1001
    %1003 = vmatprep.subr.mxu0 0.0
    %v1004 = vand.u32 %v100, 4294901760
    %1005 = vmatpush1.msra.mxu0 %v1004
    %1006 = vmatprep.subr.mxu0 0.0
    %v1007 = vand.u32 %v99, 4294901760
    %1008 = vmatpush1.msra.mxu0 %v1007
    %1009 = vmatprep.subr.mxu0 0.0
    %v1010 = vand.u32 %v98, 4294901760
    %1011 = vmatpush1.msra.mxu0 %v1010
    %1012 = vmatprep.subr.mxu0 0.0
    %v1013 = vand.u32 %v97, 4294901760
    %1014 = vmatpush1.msra.mxu0 %v1013
    %1015 = vmatprep.subr.mxu0 0.0
    %v1016 = vand.u32 %v96, 4294901760
    %1017 = vmatpush1.msra.mxu0 %v1016
    %1018 = vmatprep.subr.mxu0 0.0
    %v1019 = vand.u32 %v95, 4294901760
    %1020 = vmatpush1.msra.mxu0 %v1019
    %1021 = vmatprep.subr.mxu0 0.0
    %v1022 = vand.u32 %v94, 4294901760
    %1023 = vmatpush1.msra.mxu0 %v1022
    %1024 = vmatprep.subr.mxu0 0.0
    %v1025 = vand.u32 %v93, 4294901760
    %1026 = vmatpush1.msra.mxu0 %v1025
    %1027 = vmatprep.subr.mxu0 0.0
    %v1028 = vand.u32 %v92, 4294901760
    %1029 = vmatpush1.msra.mxu0 %v1028
    %1030 = vmatprep.subr.mxu0 0.0
    %v1031 = vand.u32 %v91, 4294901760
    %1032 = vmatpush1.msra.mxu0 %v1031
    %1033 = vmatprep.subr.mxu0 0.0
    %v1034 = vand.u32 %v122, 4294901760
    %1035 = vmatpush2.msra.mxu0 %v1034
    %1036 = vmatprep.subr.mxu0 0.0
    %v1037 = vand.u32 %v121, 4294901760
    %1038 = vmatpush2.msra.mxu0 %v1037
    %1039 = vmatprep.subr.mxu0 0.0
    %v1040 = vand.u32 %v120, 4294901760
    %1041 = vmatpush2.msra.mxu0 %v1040
    %1042 = vmatprep.subr.mxu0 0.0
    %v1043 = vand.u32 %v119, 4294901760
    %1044 = vmatpush2.msra.mxu0 %v1043
    %1045 = vmatprep.subr.mxu0 0.0
    %v1046 = vand.u32 %v118, 4294901760
    %1047 = vmatpush2.msra.mxu0 %v1046
    %1048 = vmatprep.subr.mxu0 0.0
    %v1049 = vand.u32 %v117, 4294901760
    %1050 = vmatpush2.msra.mxu0 %v1049
    %1051 = vmatprep.subr.mxu0 0.0
    %v1052 = vand.u32 %v116, 4294901760
    %1053 = vmatpush2.msra.mxu0 %v1052
    %1054 = vmatprep.subr.mxu0 0.0
    %v1055 = vand.u32 %v115, 4294901760
    %1056 = vmatpush2.msra.mxu0 %v1055
    %1057 = vmatprep.subr.mxu0 0.0
    %v1058 = vand.u32 %v114, 4294901760
    %1059 = vmatpush2.msra.mxu0 %v1058
    %1060 = vmatprep.subr.mxu0 0.0
    %v1061 = vand.u32 %v113, 4294901760
    %1062 = vmatpush2.msra.mxu0 %v1061
    %1063 = vmatprep.subr.mxu0 0.0
    %v1064 = vand.u32 %v112, 4294901760
    %1065 = vmatpush2.msra.mxu0 %v1064
    %1066 = vmatprep.subr.mxu0 0.0
    %v1067 = vand.u32 %v111, 4294901760
    %1068 = vmatpush2.msra.mxu0 %v1067
    %1069 = vmatprep.subr.mxu0 0.0
    %v1070 = vand.u32 %v110, 4294901760
    %1071 = vmatpush2.msra.mxu0 %v1070
    %1072 = vmatprep.subr.mxu0 0.0
    %v1073 = vand.u32 %v109, 4294901760
    %1074 = vmatpush2.msra.mxu0 %v1073
    %1075 = vmatprep.subr.mxu0 0.0
    %v1076 = vand.u32 %v108, 4294901760
    %1077 = vmatpush2.msra.mxu0 %v1076
    %1078 = vmatprep.subr.mxu0 0.0
    %v1079 = vand.u32 %v107, 4294901760
    %1080 = vmatpush2.msra.mxu0 %v1079
    %v1081 = vand.u32 %v58, 4294901760
    %v1082 = vsub.f32 %v58, %v1081
    %v1083 = vand.u32 %v1082, 4294901760
    %v1084 = vsub.f32 %v1082, %v1083
    %v1085 = vand.u32 %v1084, 4294901760
    %1086 = vmatprep.mubr.f32.mxu0 %v1085
    %v1087 = vand.u32 %v56, 4294901760
    %v1088 = vsub.f32 %v56, %v1087
    %v1089 = vand.u32 %v1088, 4294901760
    %v1090 = vsub.f32 %v1088, %v1089
    %v1091 = vand.u32 %v1090, 4294901760
    %1092 = vmatmul.mubr.f32.gmra.mxu0 %v1091
    %v1093 = vpop.f32.mrf.mxu0
    %v1094 = vadd.f32 %v982, %v1093
    %v1095 = vpop.f32.mrf.mxu0
    %1096 = vdwg.mxu0
    %1097 = vmatprep.subr.mxu0 0.0
    %v1098 = vand.u32 %v106, 4294901760
    %v1099 = vsub.f32 %v106, %v1098
    %v1100 = vand.u32 %v1099, 4294901760
    %v1101 = vsub.f32 %v1099, %v1100
    %v1102 = vand.u32 %v1101, 4294901760
    %1103 = vmatpush1.msra.mxu0 %v1102
    %1104 = vmatprep.subr.mxu0 0.0
    %v1105 = vand.u32 %v105, 4294901760
    %v1106 = vsub.f32 %v105, %v1105
    %v1107 = vand.u32 %v1106, 4294901760
    %v1108 = vsub.f32 %v1106, %v1107
    %v1109 = vand.u32 %v1108, 4294901760
    %1110 = vmatpush1.msra.mxu0 %v1109
    %1111 = vmatprep.subr.mxu0 0.0
    %v1112 = vand.u32 %v104, 4294901760
    %v1113 = vsub.f32 %v104, %v1112
    %v1114 = vand.u32 %v1113, 4294901760
    %v1115 = vsub.f32 %v1113, %v1114
    %v1116 = vand.u32 %v1115, 4294901760
    %1117 = vmatpush1.msra.mxu0 %v1116
    %1118 = vmatprep.subr.mxu0 0.0
    %v1119 = vand.u32 %v103, 4294901760
    %v1120 = vsub.f32 %v103, %v1119
    %v1121 = vand.u32 %v1120, 4294901760
    %v1122 = vsub.f32 %v1120, %v1121
    %v1123 = vand.u32 %v1122, 4294901760
    %1124 = vmatpush1.msra.mxu0 %v1123
    %1125 = vmatprep.subr.mxu0 0.0
    %v1126 = vand.u32 %v102, 4294901760
    %v1127 = vsub.f32 %v102, %v1126
    %v1128 = vand.u32 %v1127, 4294901760
    %v1129 = vsub.f32 %v1127, %v1128
    %v1130 = vand.u32 %v1129, 4294901760
    %1131 = vmatpush1.msra.mxu0 %v1130
    %1132 = vmatprep.subr.mxu0 0.0
    %v1133 = vand.u32 %v101, 4294901760
    %v1134 = vsub.f32 %v101, %v1133
    %v1135 = vand.u32 %v1134, 4294901760
    %v1136 = vsub.f32 %v1134, %v1135
    %v1137 = vand.u32 %v1136, 4294901760
    %1138 = vmatpush1.msra.mxu0 %v1137
    %1139 = vmatprep.subr.mxu0 0.0
    %v1140 = vand.u32 %v100, 4294901760
    %v1141 = vsub.f32 %v100, %v1140
    %v1142 = vand.u32 %v1141, 4294901760
    %v1143 = vsub.f32 %v1141, %v1142
    %v1144 = vand.u32 %v1143, 4294901760
    %1145 = vmatpush1.msra.mxu0 %v1144
    %1146 = vmatprep.subr.mxu0 0.0
    %v1147 = vand.u32 %v99, 4294901760
    %v1148 = vsub.f32 %v99, %v1147
    %v1149 = vand.u32 %v1148, 4294901760
    %v1150 = vsub.f32 %v1148, %v1149
    %v1151 = vand.u32 %v1150, 4294901760
    %1152 = vmatpush1.msra.mxu0 %v1151
    %1153 = vmatprep.subr.mxu0 0.0
    %v1154 = vand.u32 %v98, 4294901760
    %v1155 = vsub.f32 %v98, %v1154
    %v1156 = vand.u32 %v1155, 4294901760
    %v1157 = vsub.f32 %v1155, %v1156
    %v1158 = vand.u32 %v1157, 4294901760
    %1159 = vmatpush1.msra.mxu0 %v1158
    %1160 = vmatprep.subr.mxu0 0.0
    %v1161 = vand.u32 %v97, 4294901760
    %v1162 = vsub.f32 %v97, %v1161
    %v1163 = vand.u32 %v1162, 4294901760
    %v1164 = vsub.f32 %v1162, %v1163
    %v1165 = vand.u32 %v1164, 4294901760
    %1166 = vmatpush1.msra.mxu0 %v1165
    %1167 = vmatprep.subr.mxu0 0.0
    %v1168 = vand.u32 %v96, 4294901760
    %v1169 = vsub.f32 %v96, %v1168
    %v1170 = vand.u32 %v1169, 4294901760
    %v1171 = vsub.f32 %v1169, %v1170
    %v1172 = vand.u32 %v1171, 4294901760
    %1173 = vmatpush1.msra.mxu0 %v1172
    %1174 = vmatprep.subr.mxu0 0.0
    %v1175 = vand.u32 %v95, 4294901760
    %v1176 = vsub.f32 %v95, %v1175
    %v1177 = vand.u32 %v1176, 4294901760
    %v1178 = vsub.f32 %v1176, %v1177
    %v1179 = vand.u32 %v1178, 4294901760
    %1180 = vmatpush1.msra.mxu0 %v1179
    %1181 = vmatprep.subr.mxu0 0.0
    %v1182 = vand.u32 %v94, 4294901760
    %v1183 = vsub.f32 %v94, %v1182
    %v1184 = vand.u32 %v1183, 4294901760
    %v1185 = vsub.f32 %v1183, %v1184
    %v1186 = vand.u32 %v1185, 4294901760
    %1187 = vmatpush1.msra.mxu0 %v1186
    %1188 = vmatprep.subr.mxu0 0.0
    %v1189 = vand.u32 %v93, 4294901760
    %v1190 = vsub.f32 %v93, %v1189
    %v1191 = vand.u32 %v1190, 4294901760
    %v1192 = vsub.f32 %v1190, %v1191
    %v1193 = vand.u32 %v1192, 4294901760
    %1194 = vmatpush1.msra.mxu0 %v1193
    %1195 = vmatprep.subr.mxu0 0.0
    %v1196 = vand.u32 %v92, 4294901760
    %v1197 = vsub.f32 %v92, %v1196
    %v1198 = vand.u32 %v1197, 4294901760
    %v1199 = vsub.f32 %v1197, %v1198
    %v1200 = vand.u32 %v1199, 4294901760
    %1201 = vmatpush1.msra.mxu0 %v1200
    %1202 = vmatprep.subr.mxu0 0.0
    %v1203 = vand.u32 %v91, 4294901760
    %v1204 = vsub.f32 %v91, %v1203
    %v1205 = vand.u32 %v1204, 4294901760
    %v1206 = vsub.f32 %v1204, %v1205
    %v1207 = vand.u32 %v1206, 4294901760
    %1208 = vmatpush1.msra.mxu0 %v1207
    %1209 = vmatprep.subr.mxu0 0.0
    %v1210 = vand.u32 %v122, 4294901760
    %v1211 = vsub.f32 %v122, %v1210
    %v1212 = vand.u32 %v1211, 4294901760
    %v1213 = vsub.f32 %v1211, %v1212
    %v1214 = vand.u32 %v1213, 4294901760
    %1215 = vmatpush2.msra.mxu0 %v1214
    %1216 = vmatprep.subr.mxu0 0.0
    %v1217 = vand.u32 %v121, 4294901760
    %v1218 = vsub.f32 %v121, %v1217
    %v1219 = vand.u32 %v1218, 4294901760
    %v1220 = vsub.f32 %v1218, %v1219
    %v1221 = vand.u32 %v1220, 4294901760
    %1222 = vmatpush2.msra.mxu0 %v1221
    %1223 = vmatprep.subr.mxu0 0.0
    %v1224 = vand.u32 %v120, 4294901760
    %v1225 = vsub.f32 %v120, %v1224
    %v1226 = vand.u32 %v1225, 4294901760
    %v1227 = vsub.f32 %v1225, %v1226
    %v1228 = vand.u32 %v1227, 4294901760
    %1229 = vmatpush2.msra.mxu0 %v1228
    %1230 = vmatprep.subr.mxu0 0.0
    %v1231 = vand.u32 %v119, 4294901760
    %v1232 = vsub.f32 %v119, %v1231
    %v1233 = vand.u32 %v1232, 4294901760
    %v1234 = vsub.f32 %v1232, %v1233
    %v1235 = vand.u32 %v1234, 4294901760
    %1236 = vmatpush2.msra.mxu0 %v1235
    %1237 = vmatprep.subr.mxu0 0.0
    %v1238 = vand.u32 %v118, 4294901760
    %v1239 = vsub.f32 %v118, %v1238
    %v1240 = vand.u32 %v1239, 4294901760
    %v1241 = vsub.f32 %v1239, %v1240
    %v1242 = vand.u32 %v1241, 4294901760
    %1243 = vmatpush2.msra.mxu0 %v1242
    %1244 = vmatprep.subr.mxu0 0.0
    %v1245 = vand.u32 %v117, 4294901760
    %v1246 = vsub.f32 %v117, %v1245
    %v1247 = vand.u32 %v1246, 4294901760
    %v1248 = vsub.f32 %v1246, %v1247
    %v1249 = vand.u32 %v1248, 4294901760
    %1250 = vmatpush2.msra.mxu0 %v1249
    %1251 = vmatprep.subr.mxu0 0.0
    %v1252 = vand.u32 %v116, 4294901760
    %v1253 = vsub.f32 %v116, %v1252
    %v1254 = vand.u32 %v1253, 4294901760
    %v1255 = vsub.f32 %v1253, %v1254
    %v1256 = vand.u32 %v1255, 4294901760
    %1257 = vmatpush2.msra.mxu0 %v1256
    %1258 = vmatprep.subr.mxu0 0.0
    %v1259 = vand.u32 %v115, 4294901760
    %v1260 = vsub.f32 %v115, %v1259
    %v1261 = vand.u32 %v1260, 4294901760
    %v1262 = vsub.f32 %v1260, %v1261
    %v1263 = vand.u32 %v1262, 4294901760
    %1264 = vmatpush2.msra.mxu0 %v1263
    %1265 = vmatprep.subr.mxu0 0.0
    %v1266 = vand.u32 %v114, 4294901760
    %v1267 = vsub.f32 %v114, %v1266
    %v1268 = vand.u32 %v1267, 4294901760
    %v1269 = vsub.f32 %v1267, %v1268
    %v1270 = vand.u32 %v1269, 4294901760
    %1271 = vmatpush2.msra.mxu0 %v1270
    %1272 = vmatprep.subr.mxu0 0.0
    %v1273 = vand.u32 %v113, 4294901760
    %v1274 = vsub.f32 %v113, %v1273
    %v1275 = vand.u32 %v1274, 4294901760
    %v1276 = vsub.f32 %v1274, %v1275
    %v1277 = vand.u32 %v1276, 4294901760
    %1278 = vmatpush2.msra.mxu0 %v1277
    %1279 = vmatprep.subr.mxu0 0.0
    %v1280 = vand.u32 %v112, 4294901760
    %v1281 = vsub.f32 %v112, %v1280
    %v1282 = vand.u32 %v1281, 4294901760
    %v1283 = vsub.f32 %v1281, %v1282
    %v1284 = vand.u32 %v1283, 4294901760
    %1285 = vmatpush2.msra.mxu0 %v1284
    %1286 = vmatprep.subr.mxu0 0.0
    %v1287 = vand.u32 %v111, 4294901760
    %v1288 = vsub.f32 %v111, %v1287
    %v1289 = vand.u32 %v1288, 4294901760
    %v1290 = vsub.f32 %v1288, %v1289
    %v1291 = vand.u32 %v1290, 4294901760
    %1292 = vmatpush2.msra.mxu0 %v1291
    %1293 = vmatprep.subr.mxu0 0.0
    %v1294 = vand.u32 %v110, 4294901760
    %v1295 = vsub.f32 %v110, %v1294
    %v1296 = vand.u32 %v1295, 4294901760
    %v1297 = vsub.f32 %v1295, %v1296
    %v1298 = vand.u32 %v1297, 4294901760
    %1299 = vmatpush2.msra.mxu0 %v1298
    %1300 = vmatprep.subr.mxu0 0.0
    %v1301 = vand.u32 %v109, 4294901760
    %v1302 = vsub.f32 %v109, %v1301
    %v1303 = vand.u32 %v1302, 4294901760
    %v1304 = vsub.f32 %v1302, %v1303
    %v1305 = vand.u32 %v1304, 4294901760
    %1306 = vmatpush2.msra.mxu0 %v1305
    %1307 = vmatprep.subr.mxu0 0.0
    %v1308 = vand.u32 %v108, 4294901760
    %v1309 = vsub.f32 %v108, %v1308
    %v1310 = vand.u32 %v1309, 4294901760
    %v1311 = vsub.f32 %v1309, %v1310
    %v1312 = vand.u32 %v1311, 4294901760
    %1313 = vmatpush2.msra.mxu0 %v1312
    %1314 = vmatprep.subr.mxu0 0.0
    %v1315 = vand.u32 %v107, 4294901760
    %v1316 = vsub.f32 %v107, %v1315
    %v1317 = vand.u32 %v1316, 4294901760
    %v1318 = vsub.f32 %v1316, %v1317
    %v1319 = vand.u32 %v1318, 4294901760
    %1320 = vmatpush2.msra.mxu0 %v1319
    %v1321 = vand.u32 %v58, 4294901760
    %1322 = vmatprep.mubr.f32.mxu0 %v1321
    %v1323 = vand.u32 %v56, 4294901760
    %1324 = vmatmul.mubr.f32.gmra.mxu0 %v1323
    %v1325 = vpop.f32.mrf.mxu0
    %v1326 = vadd.f32 %v1094, %v1325
    %v1327 = vpop.f32.mrf.mxu0
    %1328 = vdwg.mxu0
    %1329 = vmatprep.subr.mxu0 0.0
    %v1330 = vand.u32 %v106, 4294901760
    %v1331 = vsub.f32 %v106, %v1330
    %1332 = vmatpush1.msra.mxu0 %v1331
    %1333 = vmatprep.subr.mxu0 0.0
    %v1334 = vand.u32 %v105, 4294901760
    %v1335 = vsub.f32 %v105, %v1334
    %1336 = vmatpush1.msra.mxu0 %v1335
    %1337 = vmatprep.subr.mxu0 0.0
    %v1338 = vand.u32 %v104, 4294901760
    %v1339 = vsub.f32 %v104, %v1338
    %1340 = vmatpush1.msra.mxu0 %v1339
    %1341 = vmatprep.subr.mxu0 0.0
    %v1342 = vand.u32 %v103, 4294901760
    %v1343 = vsub.f32 %v103, %v1342
    %1344 = vmatpush1.msra.mxu0 %v1343
    %1345 = vmatprep.subr.mxu0 0.0
    %v1346 = vand.u32 %v102, 4294901760
    %v1347 = vsub.f32 %v102, %v1346
    %1348 = vmatpush1.msra.mxu0 %v1347
    %1349 = vmatprep.subr.mxu0 0.0
    %v1350 = vand.u32 %v101, 4294901760
    %v1351 = vsub.f32 %v101, %v1350
    %1352 = vmatpush1.msra.mxu0 %v1351
    %1353 = vmatprep.subr.mxu0 0.0
    %v1354 = vand.u32 %v100, 4294901760
    %v1355 = vsub.f32 %v100, %v1354
    %1356 = vmatpush1.msra.mxu0 %v1355
    %1357 = vmatprep.subr.mxu0 0.0
    %v1358 = vand.u32 %v99, 4294901760
    %v1359 = vsub.f32 %v99, %v1358
    %1360 = vmatpush1.msra.mxu0 %v1359
    %1361 = vmatprep.subr.mxu0 0.0
    %v1362 = vand.u32 %v98, 4294901760
    %v1363 = vsub.f32 %v98, %v1362
    %1364 = vmatpush1.msra.mxu0 %v1363
    %1365 = vmatprep.subr.mxu0 0.0
    %v1366 = vand.u32 %v97, 4294901760
    %v1367 = vsub.f32 %v97, %v1366
    %1368 = vmatpush1.msra.mxu0 %v1367
    %1369 = vmatprep.subr.mxu0 0.0
    %v1370 = vand.u32 %v96, 4294901760
    %v1371 = vsub.f32 %v96, %v1370
    %1372 = vmatpush1.msra.mxu0 %v1371
    %1373 = vmatprep.subr.mxu0 0.0
    %v1374 = vand.u32 %v95, 4294901760
    %v1375 = vsub.f32 %v95, %v1374
    %1376 = vmatpush1.msra.mxu0 %v1375
    %1377 = vmatprep.subr.mxu0 0.0
    %v1378 = vand.u32 %v94, 4294901760
    %v1379 = vsub.f32 %v94, %v1378
    %1380 = vmatpush1.msra.mxu0 %v1379
    %1381 = vmatprep.subr.mxu0 0.0
    %v1382 = vand.u32 %v93, 4294901760
    %v1383 = vsub.f32 %v93, %v1382
    %1384 = vmatpush1.msra.mxu0 %v1383
    %1385 = vmatprep.subr.mxu0 0.0
    %v1386 = vand.u32 %v92, 4294901760
    %v1387 = vsub.f32 %v92, %v1386
    %1388 = vmatpush1.msra.mxu0 %v1387
    %1389 = vmatprep.subr.mxu0 0.0
    %v1390 = vand.u32 %v91, 4294901760
    %v1391 = vsub.f32 %v91, %v1390
    %1392 = vmatpush1.msra.mxu0 %v1391
    %1393 = vmatprep.subr.mxu0 0.0
    %v1394 = vand.u32 %v122, 4294901760
    %v1395 = vsub.f32 %v122, %v1394
    %1396 = vmatpush2.msra.mxu0 %v1395
    %1397 = vmatprep.subr.mxu0 0.0
    %v1398 = vand.u32 %v121, 4294901760
    %v1399 = vsub.f32 %v121, %v1398
    %1400 = vmatpush2.msra.mxu0 %v1399
    %1401 = vmatprep.subr.mxu0 0.0
    %v1402 = vand.u32 %v120, 4294901760
    %v1403 = vsub.f32 %v120, %v1402
    %1404 = vmatpush2.msra.mxu0 %v1403
    %1405 = vmatprep.subr.mxu0 0.0
    %v1406 = vand.u32 %v119, 4294901760
    %v1407 = vsub.f32 %v119, %v1406
    %1408 = vmatpush2.msra.mxu0 %v1407
    %1409 = vmatprep.subr.mxu0 0.0
    %v1410 = vand.u32 %v118, 4294901760
    %v1411 = vsub.f32 %v118, %v1410
    %1412 = vmatpush2.msra.mxu0 %v1411
    %1413 = vmatprep.subr.mxu0 0.0
    %v1414 = vand.u32 %v117, 4294901760
    %v1415 = vsub.f32 %v117, %v1414
    %1416 = vmatpush2.msra.mxu0 %v1415
    %1417 = vmatprep.subr.mxu0 0.0
    %v1418 = vand.u32 %v116, 4294901760
    %v1419 = vsub.f32 %v116, %v1418
    %1420 = vmatpush2.msra.mxu0 %v1419
    %1421 = vmatprep.subr.mxu0 0.0
    %v1422 = vand.u32 %v115, 4294901760
    %v1423 = vsub.f32 %v115, %v1422
    %1424 = vmatpush2.msra.mxu0 %v1423
    %1425 = vmatprep.subr.mxu0 0.0
    %v1426 = vand.u32 %v114, 4294901760
    %v1427 = vsub.f32 %v114, %v1426
    %1428 = vmatpush2.msra.mxu0 %v1427
    %1429 = vmatprep.subr.mxu0 0.0
    %v1430 = vand.u32 %v113, 4294901760
    %v1431 = vsub.f32 %v113, %v1430
    %1432 = vmatpush2.msra.mxu0 %v1431
    %1433 = vmatprep.subr.mxu0 0.0
    %v1434 = vand.u32 %v112, 4294901760
    %v1435 = vsub.f32 %v112, %v1434
    %1436 = vmatpush2.msra.mxu0 %v1435
    %1437 = vmatprep.subr.mxu0 0.0
    %v1438 = vand.u32 %v111, 4294901760
    %v1439 = vsub.f32 %v111, %v1438
    %1440 = vmatpush2.msra.mxu0 %v1439
    %1441 = vmatprep.subr.mxu0 0.0
    %v1442 = vand.u32 %v110, 4294901760
    %v1443 = vsub.f32 %v110, %v1442
    %1444 = vmatpush2.msra.mxu0 %v1443
    %1445 = vmatprep.subr.mxu0 0.0
    %v1446 = vand.u32 %v109, 4294901760
    %v1447 = vsub.f32 %v109, %v1446
    %1448 = vmatpush2.msra.mxu0 %v1447
    %1449 = vmatprep.subr.mxu0 0.0
    %v1450 = vand.u32 %v108, 4294901760
    %v1451 = vsub.f32 %v108, %v1450
    %1452 = vmatpush2.msra.mxu0 %v1451
    %1453 = vmatprep.subr.mxu0 0.0
    %v1454 = vand.u32 %v107, 4294901760
    %v1455 = vsub.f32 %v107, %v1454
    %1456 = vmatpush2.msra.mxu0 %v1455
    %v1457 = vand.u32 %v58, 4294901760
    %v1458 = vsub.f32 %v58, %v1457
    %1459 = vmatprep.mubr.f32.mxu0 %v1458
    %v1460 = vand.u32 %v56, 4294901760
    %v1461 = vsub.f32 %v56, %v1460
    %1462 = vmatmul.mubr.f32.gmra.mxu0 %v1461
    %v1463 = vpop.f32.mrf.mxu0
    %v1464 = vadd.f32 %v1326, %v1463
    %v1465 = vpop.f32.mrf.mxu0
    %1466 = vdwg.mxu0
    %1467 = vmatprep.subr.mxu0 0.0
    %v1468 = vand.u32 %v106, 4294901760
    %1469 = vmatpush1.msra.mxu0 %v1468
    %1470 = vmatprep.subr.mxu0 0.0
    %v1471 = vand.u32 %v105, 4294901760
    %1472 = vmatpush1.msra.mxu0 %v1471
    %1473 = vmatprep.subr.mxu0 0.0
    %v1474 = vand.u32 %v104, 4294901760
    %1475 = vmatpush1.msra.mxu0 %v1474
    %1476 = vmatprep.subr.mxu0 0.0
    %v1477 = vand.u32 %v103, 4294901760
    %1478 = vmatpush1.msra.mxu0 %v1477
    %1479 = vmatprep.subr.mxu0 0.0
    %v1480 = vand.u32 %v102, 4294901760
    %1481 = vmatpush1.msra.mxu0 %v1480
    %1482 = vmatprep.subr.mxu0 0.0
    %v1483 = vand.u32 %v101, 4294901760
    %1484 = vmatpush1.msra.mxu0 %v1483
    %1485 = vmatprep.subr.mxu0 0.0
    %v1486 = vand.u32 %v100, 4294901760
    %1487 = vmatpush1.msra.mxu0 %v1486
    %1488 = vmatprep.subr.mxu0 0.0
    %v1489 = vand.u32 %v99, 4294901760
    %1490 = vmatpush1.msra.mxu0 %v1489
    %1491 = vmatprep.subr.mxu0 0.0
    %v1492 = vand.u32 %v98, 4294901760
    %1493 = vmatpush1.msra.mxu0 %v1492
    %1494 = vmatprep.subr.mxu0 0.0
    %v1495 = vand.u32 %v97, 4294901760
    %1496 = vmatpush1.msra.mxu0 %v1495
    %1497 = vmatprep.subr.mxu0 0.0
    %v1498 = vand.u32 %v96, 4294901760
    %1499 = vmatpush1.msra.mxu0 %v1498
    %1500 = vmatprep.subr.mxu0 0.0
    %v1501 = vand.u32 %v95, 4294901760
    %1502 = vmatpush1.msra.mxu0 %v1501
    %1503 = vmatprep.subr.mxu0 0.0
    %v1504 = vand.u32 %v94, 4294901760
    %1505 = vmatpush1.msra.mxu0 %v1504
    %1506 = vmatprep.subr.mxu0 0.0
    %v1507 = vand.u32 %v93, 4294901760
    %1508 = vmatpush1.msra.mxu0 %v1507
    %1509 = vmatprep.subr.mxu0 0.0
    %v1510 = vand.u32 %v92, 4294901760
    %1511 = vmatpush1.msra.mxu0 %v1510
    %1512 = vmatprep.subr.mxu0 0.0
    %v1513 = vand.u32 %v91, 4294901760
    %1514 = vmatpush1.msra.mxu0 %v1513
    %1515 = vmatprep.subr.mxu0 0.0
    %v1516 = vand.u32 %v122, 4294901760
    %1517 = vmatpush2.msra.mxu0 %v1516
    %1518 = vmatprep.subr.mxu0 0.0
    %v1519 = vand.u32 %v121, 4294901760
    %1520 = vmatpush2.msra.mxu0 %v1519
    %1521 = vmatprep.subr.mxu0 0.0
    %v1522 = vand.u32 %v120, 4294901760
    %1523 = vmatpush2.msra.mxu0 %v1522
    %1524 = vmatprep.subr.mxu0 0.0
    %v1525 = vand.u32 %v119, 4294901760
    %1526 = vmatpush2.msra.mxu0 %v1525
    %1527 = vmatprep.subr.mxu0 0.0
    %v1528 = vand.u32 %v118, 4294901760
    %1529 = vmatpush2.msra.mxu0 %v1528
    %1530 = vmatprep.subr.mxu0 0.0
    %v1531 = vand.u32 %v117, 4294901760
    %1532 = vmatpush2.msra.mxu0 %v1531
    %1533 = vmatprep.subr.mxu0 0.0
    %v1534 = vand.u32 %v116, 4294901760
    %1535 = vmatpush2.msra.mxu0 %v1534
    %1536 = vmatprep.subr.mxu0 0.0
    %v1537 = vand.u32 %v115, 4294901760
    %1538 = vmatpush2.msra.mxu0 %v1537
    %1539 = vmatprep.subr.mxu0 0.0
    %v1540 = vand.u32 %v114, 4294901760
    %1541 = vmatpush2.msra.mxu0 %v1540
    %1542 = vmatprep.subr.mxu0 0.0
    %v1543 = vand.u32 %v113, 4294901760
    %1544 = vmatpush2.msra.mxu0 %v1543
    %1545 = vmatprep.subr.mxu0 0.0
    %v1546 = vand.u32 %v112, 4294901760
    %1547 = vmatpush2.msra.mxu0 %v1546
    %1548 = vmatprep.subr.mxu0 0.0
    %v1549 = vand.u32 %v111, 4294901760
    %1550 = vmatpush2.msra.mxu0 %v1549
    %1551 = vmatprep.subr.mxu0 0.0
    %v1552 = vand.u32 %v110, 4294901760
    %1553 = vmatpush2.msra.mxu0 %v1552
    %1554 = vmatprep.subr.mxu0 0.0
    %v1555 = vand.u32 %v109, 4294901760
    %1556 = vmatpush2.msra.mxu0 %v1555
    %1557 = vmatprep.subr.mxu0 0.0
    %v1558 = vand.u32 %v108, 4294901760
    %1559 = vmatpush2.msra.mxu0 %v1558
    %1560 = vmatprep.subr.mxu0 0.0
    %v1561 = vand.u32 %v107, 4294901760
    %1562 = vmatpush2.msra.mxu0 %v1561
    %v1563 = vand.u32 %v58, 4294901760
    %v1564 = vsub.f32 %v58, %v1563
    %v1565 = vand.u32 %v1564, 4294901760
    %1566 = vmatprep.mubr.f32.mxu0 %v1565
    %v1567 = vand.u32 %v56, 4294901760
    %v1568 = vsub.f32 %v56, %v1567
    %v1569 = vand.u32 %v1568, 4294901760
    %1570 = vmatmul.mubr.f32.gmra.mxu0 %v1569
    %v1571 = vpop.f32.mrf.mxu0
    %v1572 = vadd.f32 %v1464, %v1571
    %v1573 = vpop.f32.mrf.mxu0
    %1574 = vdwg.mxu0
    %1575 = vmatprep.subr.mxu0 0.0
    %v1576 = vand.u32 %v106, 4294901760
    %v1577 = vsub.f32 %v106, %v1576
    %v1578 = vand.u32 %v1577, 4294901760
    %1579 = vmatpush1.msra.mxu0 %v1578
    %1580 = vmatprep.subr.mxu0 0.0
    %v1581 = vand.u32 %v105, 4294901760
    %v1582 = vsub.f32 %v105, %v1581
    %v1583 = vand.u32 %v1582, 4294901760
    %1584 = vmatpush1.msra.mxu0 %v1583
    %1585 = vmatprep.subr.mxu0 0.0
    %v1586 = vand.u32 %v104, 4294901760
    %v1587 = vsub.f32 %v104, %v1586
    %v1588 = vand.u32 %v1587, 4294901760
    %1589 = vmatpush1.msra.mxu0 %v1588
    %1590 = vmatprep.subr.mxu0 0.0
    %v1591 = vand.u32 %v103, 4294901760
    %v1592 = vsub.f32 %v103, %v1591
    %v1593 = vand.u32 %v1592, 4294901760
    %1594 = vmatpush1.msra.mxu0 %v1593
    %1595 = vmatprep.subr.mxu0 0.0
    %v1596 = vand.u32 %v102, 4294901760
    %v1597 = vsub.f32 %v102, %v1596
    %v1598 = vand.u32 %v1597, 4294901760
    %1599 = vmatpush1.msra.mxu0 %v1598
    %1600 = vmatprep.subr.mxu0 0.0
    %v1601 = vand.u32 %v101, 4294901760
    %v1602 = vsub.f32 %v101, %v1601
    %v1603 = vand.u32 %v1602, 4294901760
    %1604 = vmatpush1.msra.mxu0 %v1603
    %1605 = vmatprep.subr.mxu0 0.0
    %v1606 = vand.u32 %v100, 4294901760
    %v1607 = vsub.f32 %v100, %v1606
    %v1608 = vand.u32 %v1607, 4294901760
    %1609 = vmatpush1.msra.mxu0 %v1608
    %1610 = vmatprep.subr.mxu0 0.0
    %v1611 = vand.u32 %v99, 4294901760
    %v1612 = vsub.f32 %v99, %v1611
    %v1613 = vand.u32 %v1612, 4294901760
    %1614 = vmatpush1.msra.mxu0 %v1613
    %1615 = vmatprep.subr.mxu0 0.0
    %v1616 = vand.u32 %v98, 4294901760
    %v1617 = vsub.f32 %v98, %v1616
    %v1618 = vand.u32 %v1617, 4294901760
    %1619 = vmatpush1.msra.mxu0 %v1618
    %1620 = vmatprep.subr.mxu0 0.0
    %v1621 = vand.u32 %v97, 4294901760
    %v1622 = vsub.f32 %v97, %v1621
    %v1623 = vand.u32 %v1622, 4294901760
    %1624 = vmatpush1.msra.mxu0 %v1623
    %1625 = vmatprep.subr.mxu0 0.0
    %v1626 = vand.u32 %v96, 4294901760
    %v1627 = vsub.f32 %v96, %v1626
    %v1628 = vand.u32 %v1627, 4294901760
    %1629 = vmatpush1.msra.mxu0 %v1628
    %1630 = vmatprep.subr.mxu0 0.0
    %v1631 = vand.u32 %v95, 4294901760
    %v1632 = vsub.f32 %v95, %v1631
    %v1633 = vand.u32 %v1632, 4294901760
    %1634 = vmatpush1.msra.mxu0 %v1633
    %1635 = vmatprep.subr.mxu0 0.0
    %v1636 = vand.u32 %v94, 4294901760
    %v1637 = vsub.f32 %v94, %v1636
    %v1638 = vand.u32 %v1637, 4294901760
    %1639 = vmatpush1.msra.mxu0 %v1638
    %1640 = vmatprep.subr.mxu0 0.0
    %v1641 = vand.u32 %v93, 4294901760
    %v1642 = vsub.f32 %v93, %v1641
    %v1643 = vand.u32 %v1642, 4294901760
    %1644 = vmatpush1.msra.mxu0 %v1643
    %1645 = vmatprep.subr.mxu0 0.0
    %v1646 = vand.u32 %v92, 4294901760
    %v1647 = vsub.f32 %v92, %v1646
    %v1648 = vand.u32 %v1647, 4294901760
    %1649 = vmatpush1.msra.mxu0 %v1648
    %1650 = vmatprep.subr.mxu0 0.0
    %v1651 = vand.u32 %v91, 4294901760
    %v1652 = vsub.f32 %v91, %v1651
    %v1653 = vand.u32 %v1652, 4294901760
    %1654 = vmatpush1.msra.mxu0 %v1653
    %1655 = vmatprep.subr.mxu0 0.0
    %v1656 = vand.u32 %v122, 4294901760
    %v1657 = vsub.f32 %v122, %v1656
    %v1658 = vand.u32 %v1657, 4294901760
    %1659 = vmatpush2.msra.mxu0 %v1658
    %1660 = vmatprep.subr.mxu0 0.0
    %v1661 = vand.u32 %v121, 4294901760
    %v1662 = vsub.f32 %v121, %v1661
    %v1663 = vand.u32 %v1662, 4294901760
    %1664 = vmatpush2.msra.mxu0 %v1663
    %1665 = vmatprep.subr.mxu0 0.0
    %v1666 = vand.u32 %v120, 4294901760
    %v1667 = vsub.f32 %v120, %v1666
    %v1668 = vand.u32 %v1667, 4294901760
    %1669 = vmatpush2.msra.mxu0 %v1668
    %1670 = vmatprep.subr.mxu0 0.0
    %v1671 = vand.u32 %v119, 4294901760
    %v1672 = vsub.f32 %v119, %v1671
    %v1673 = vand.u32 %v1672, 4294901760
    %1674 = vmatpush2.msra.mxu0 %v1673
    %1675 = vmatprep.subr.mxu0 0.0
    %v1676 = vand.u32 %v118, 4294901760
    %v1677 = vsub.f32 %v118, %v1676
    %v1678 = vand.u32 %v1677, 4294901760
    %1679 = vmatpush2.msra.mxu0 %v1678
    %1680 = vmatprep.subr.mxu0 0.0
    %v1681 = vand.u32 %v117, 4294901760
    %v1682 = vsub.f32 %v117, %v1681
    %v1683 = vand.u32 %v1682, 4294901760
    %1684 = vmatpush2.msra.mxu0 %v1683
    %1685 = vmatprep.subr.mxu0 0.0
    %v1686 = vand.u32 %v116, 4294901760
    %v1687 = vsub.f32 %v116, %v1686
    %v1688 = vand.u32 %v1687, 4294901760
    %1689 = vmatpush2.msra.mxu0 %v1688
    %1690 = vmatprep.subr.mxu0 0.0
    %v1691 = vand.u32 %v115, 4294901760
    %v1692 = vsub.f32 %v115, %v1691
    %v1693 = vand.u32 %v1692, 4294901760
    %1694 = vmatpush2.msra.mxu0 %v1693
    %1695 = vmatprep.subr.mxu0 0.0
    %v1696 = vand.u32 %v114, 4294901760
    %v1697 = vsub.f32 %v114, %v1696
    %v1698 = vand.u32 %v1697, 4294901760
    %1699 = vmatpush2.msra.mxu0 %v1698
    %1700 = vmatprep.subr.mxu0 0.0
    %v1701 = vand.u32 %v113, 4294901760
    %v1702 = vsub.f32 %v113, %v1701
    %v1703 = vand.u32 %v1702, 4294901760
    %1704 = vmatpush2.msra.mxu0 %v1703
    %1705 = vmatprep.subr.mxu0 0.0
    %v1706 = vand.u32 %v112, 4294901760
    %v1707 = vsub.f32 %v112, %v1706
    %v1708 = vand.u32 %v1707, 4294901760
    %1709 = vmatpush2.msra.mxu0 %v1708
    %1710 = vmatprep.subr.mxu0 0.0
    %v1711 = vand.u32 %v111, 4294901760
    %v1712 = vsub.f32 %v111, %v1711
    %v1713 = vand.u32 %v1712, 4294901760
    %1714 = vmatpush2.msra.mxu0 %v1713
    %1715 = vmatprep.subr.mxu0 0.0
    %v1716 = vand.u32 %v110, 4294901760
    %v1717 = vsub.f32 %v110, %v1716
    %v1718 = vand.u32 %v1717, 4294901760
    %1719 = vmatpush2.msra.mxu0 %v1718
    %1720 = vmatprep.subr.mxu0 0.0
    %v1721 = vand.u32 %v109, 4294901760
    %v1722 = vsub.f32 %v109, %v1721
    %v1723 = vand.u32 %v1722, 4294901760
    %1724 = vmatpush2.msra.mxu0 %v1723
    %1725 = vmatprep.subr.mxu0 0.0
    %v1726 = vand.u32 %v108, 4294901760
    %v1727 = vsub.f32 %v108, %v1726
    %v1728 = vand.u32 %v1727, 4294901760
    %1729 = vmatpush2.msra.mxu0 %v1728
    %1730 = vmatprep.subr.mxu0 0.0
    %v1731 = vand.u32 %v107, 4294901760
    %v1732 = vsub.f32 %v107, %v1731
    %v1733 = vand.u32 %v1732, 4294901760
    %1734 = vmatpush2.msra.mxu0 %v1733
    %v1735 = vand.u32 %v58, 4294901760
    %1736 = vmatprep.mubr.f32.mxu0 %v1735
    %v1737 = vand.u32 %v56, 4294901760
    %1738 = vmatmul.mubr.f32.gmra.mxu0 %v1737
    %v1739 = vpop.f32.mrf.mxu0
    %v1740 = vadd.f32 %v1572, %v1739
    %v1741 = vpop.f32.mrf.mxu0
    %1742 = vdwg.mxu0
    %1743 = vmatprep.subr.mxu0 0.0
    %v1744 = vand.u32 %v106, 4294901760
    %1745 = vmatpush1.msra.mxu0 %v1744
    %1746 = vmatprep.subr.mxu0 0.0
    %v1747 = vand.u32 %v105, 4294901760
    %1748 = vmatpush1.msra.mxu0 %v1747
    %1749 = vmatprep.subr.mxu0 0.0
    %v1750 = vand.u32 %v104, 4294901760
    %1751 = vmatpush1.msra.mxu0 %v1750
    %1752 = vmatprep.subr.mxu0 0.0
    %v1753 = vand.u32 %v103, 4294901760
    %1754 = vmatpush1.msra.mxu0 %v1753
    %1755 = vmatprep.subr.mxu0 0.0
    %v1756 = vand.u32 %v102, 4294901760
    %1757 = vmatpush1.msra.mxu0 %v1756
    %1758 = vmatprep.subr.mxu0 0.0
    %v1759 = vand.u32 %v101, 4294901760
    %1760 = vmatpush1.msra.mxu0 %v1759
    %1761 = vmatprep.subr.mxu0 0.0
    %v1762 = vand.u32 %v100, 4294901760
    %1763 = vmatpush1.msra.mxu0 %v1762
    %1764 = vmatprep.subr.mxu0 0.0
    %v1765 = vand.u32 %v99, 4294901760
    %1766 = vmatpush1.msra.mxu0 %v1765
    %1767 = vmatprep.subr.mxu0 0.0
    %v1768 = vand.u32 %v98, 4294901760
    %1769 = vmatpush1.msra.mxu0 %v1768
    %1770 = vmatprep.subr.mxu0 0.0
    %v1771 = vand.u32 %v97, 4294901760
    %1772 = vmatpush1.msra.mxu0 %v1771
    %1773 = vmatprep.subr.mxu0 0.0
    %v1774 = vand.u32 %v96, 4294901760
    %1775 = vmatpush1.msra.mxu0 %v1774
    %1776 = vmatprep.subr.mxu0 0.0
    %v1777 = vand.u32 %v95, 4294901760
    %1778 = vmatpush1.msra.mxu0 %v1777
    %1779 = vmatprep.subr.mxu0 0.0
    %v1780 = vand.u32 %v94, 4294901760
    %1781 = vmatpush1.msra.mxu0 %v1780
    %1782 = vmatprep.subr.mxu0 0.0
    %v1783 = vand.u32 %v93, 4294901760
    %1784 = vmatpush1.msra.mxu0 %v1783
    %1785 = vmatprep.subr.mxu0 0.0
    %v1786 = vand.u32 %v92, 4294901760
    %1787 = vmatpush1.msra.mxu0 %v1786
    %1788 = vmatprep.subr.mxu0 0.0
    %v1789 = vand.u32 %v91, 4294901760
    %1790 = vmatpush1.msra.mxu0 %v1789
    %1791 = vmatprep.subr.mxu0 0.0
    %v1792 = vand.u32 %v122, 4294901760
    %1793 = vmatpush2.msra.mxu0 %v1792
    %1794 = vmatprep.subr.mxu0 0.0
    %v1795 = vand.u32 %v121, 4294901760
    %1796 = vmatpush2.msra.mxu0 %v1795
    %1797 = vmatprep.subr.mxu0 0.0
    %v1798 = vand.u32 %v120, 4294901760
    %1799 = vmatpush2.msra.mxu0 %v1798
    %1800 = vmatprep.subr.mxu0 0.0
    %v1801 = vand.u32 %v119, 4294901760
    %1802 = vmatpush2.msra.mxu0 %v1801
    %1803 = vmatprep.subr.mxu0 0.0
    %v1804 = vand.u32 %v118, 4294901760
    %1805 = vmatpush2.msra.mxu0 %v1804
    %1806 = vmatprep.subr.mxu0 0.0
    %v1807 = vand.u32 %v117, 4294901760
    %1808 = vmatpush2.msra.mxu0 %v1807
    %1809 = vmatprep.subr.mxu0 0.0
    %v1810 = vand.u32 %v116, 4294901760
    %1811 = vmatpush2.msra.mxu0 %v1810
    %1812 = vmatprep.subr.mxu0 0.0
    %v1813 = vand.u32 %v115, 4294901760
    %1814 = vmatpush2.msra.mxu0 %v1813
    %1815 = vmatprep.subr.mxu0 0.0
    %v1816 = vand.u32 %v114, 4294901760
    %1817 = vmatpush2.msra.mxu0 %v1816
    %1818 = vmatprep.subr.mxu0 0.0
    %v1819 = vand.u32 %v113, 4294901760
    %1820 = vmatpush2.msra.mxu0 %v1819
    %1821 = vmatprep.subr.mxu0 0.0
    %v1822 = vand.u32 %v112, 4294901760
    %1823 = vmatpush2.msra.mxu0 %v1822
    %1824 = vmatprep.subr.mxu0 0.0
    %v1825 = vand.u32 %v111, 4294901760
    %1826 = vmatpush2.msra.mxu0 %v1825
    %1827 = vmatprep.subr.mxu0 0.0
    %v1828 = vand.u32 %v110, 4294901760
    %1829 = vmatpush2.msra.mxu0 %v1828
    %1830 = vmatprep.subr.mxu0 0.0
    %v1831 = vand.u32 %v109, 4294901760
    %1832 = vmatpush2.msra.mxu0 %v1831
    %1833 = vmatprep.subr.mxu0 0.0
    %v1834 = vand.u32 %v108, 4294901760
    %1835 = vmatpush2.msra.mxu0 %v1834
    %1836 = vmatprep.subr.mxu0 0.0
    %v1837 = vand.u32 %v107, 4294901760
    %1838 = vmatpush2.msra.mxu0 %v1837
    %v1839 = vand.u32 %v58, 4294901760
    %1840 = vmatprep.mubr.f32.mxu0 %v1839
    %v1841 = vand.u32 %v56, 4294901760
    %1842 = vmatmul.mubr.f32.gmra.mxu0 %v1841
    %v1843 = vpop.f32.mrf.mxu0
    %v1844 = vadd.f32 %v1740, %v1843
    %v1845 = vpop.f32.mrf.mxu0
    %1846 = vdwg.mxu0
    %v1847 = vrcp.pop %v1844
    %v1848 = vmul.f32 1.0, %v1847
    %1850 = vset.pattern.permute.xlu0 0
    %1851 = vperm.xlu0 %1850, %v1848
    %v1852 = vpop.permute.xlu0 %1851
    %v1854 = vmul.f32 %v1844, %v1852
    %1855 = vst [vmem:[#allocation7] sm:$0xff] %v1854
    // Predicated region
    $region18: #{tpu_custom_call.1} parent=1 // pred_check
      _
    $region19: #{tpu_custom_call.1} parent=1 // pred_check_branch
      %1857 = sbr.rel (0) target = $region21
    $region20: #{tpu_custom_call.1} parent=1 // pred_region
      %s1859 = ssub.s32 128, 128
      %1860 = vsyncadd [#allocation4], %s1859
      %s1862 = sshll.u32 [#allocation7], 4
      %s1863 = int_to_ptr.vmem [resolvable:$true] %s1862
      %1865 = dma.vmem_to_hbm [thread:$0]  %s1863, 128, %s2, [#allocation4]
    $region21: #{tpu_custom_call.1} parent=1 // pred_fallthru
      _
    // Predicated region
    $region22: #{tpu_custom_call.1} parent=1 // pred_check
      _
    $region23: #{tpu_custom_call.1} parent=1 // pred_check_branch
      %1867 = sbr.rel (0) target = $region25
    $region24: #{tpu_custom_call.1} parent=1 // pred_region
      %1868 = dma.done [#allocation4], 128
    $region25: #{tpu_custom_call.1} parent=1 // pred_fallthru
      _
    %1869 = vsyncpa [#allocation3], 1
    %1870 = vsyncpa [#allocation6], 1
    %1871 = vsyncpa [#allocation4], 1

</llo_original>
